<compile_context>
chip_gen: v7x
topology: tpu7x:2x2x1
jax: 0.10.0
libtpu: 0.0.40
codegen_flags: <defaults>
</compile_context>

<pallas_src>
import functools
from math import ceil, log, sqrt

import jax
import jax.numpy as jnp
from jax.experimental import pallas as pl
from jax.experimental.pallas import tpu as pltpu


def _largest_tile(n, cap=512):
    """Largest divisor of n that is <= cap and a multiple of 8 (else n itself)."""
    if n <= cap:
        return n
    for t in range(cap, 7, -1):
        if n % t == 0 and t % 8 == 0:
            return t
    return n


# ---------------- kernel A: sparsity measurement M (QK never leaves VMEM) ----------------
def _m_kernel(q_ref, k_ref, cnt_ref, m_ref, *, inv_L_K):
    q = q_ref[0, 0]                                    # (tq, D)   f32
    k = k_ref[0, 0]                                    # (L_K, D)  f32
    cnt = cnt_ref[...]                                 # (tq, L_K) f32 sample multiplicities
    # f32 operands on purpose: M drives the top-k selection and must match the
    # f32 module semantics; contraction on D avoids an explicit K^T.
    s = jax.lax.dot_general(q, k, (((1,), (1,)), ((), ())),
                            preferred_element_type=jnp.float32)      # (tq, L_K), VMEM only
    smax = jnp.max(jnp.where(cnt > 0.0, s, -jnp.inf), axis=-1, keepdims=True)
    ssum = jnp.sum(cnt * s, axis=-1, keepdims=True)    # includes duplicate samples, like torch
    m_ref[0, 0] = smax - ssum * inv_L_K


def _prob_m(Q, K, counts, *, vmem_limit_bytes=None):
    B, H, L_Q, D = Q.shape
    L_K = K.shape[2]
    tq = _largest_tile(L_Q)
    n_q = L_Q // tq
    kernel = functools.partial(_m_kernel, inv_L_K=1.0 / L_K)
    cp = dict(dimension_semantics=("parallel", "parallel", "parallel"))
    if vmem_limit_bytes is not None:
        cp["vmem_limit_bytes"] = vmem_limit_bytes
    m = pl.pallas_call(
        kernel,
        out_shape=jax.ShapeDtypeStruct((B, H, L_Q, 1), jnp.float32),
        grid_spec=pltpu.PrefetchScalarGridSpec(
            num_scalar_prefetch=0,
            # q-tile outermost: the shared counts tile stays resident across (b, h).
            grid=(n_q, B, H),
            in_specs=[
                pl.BlockSpec((1, 1, tq, D), lambda qi, b, h: (b, h, qi, 0)),
                pl.BlockSpec((1, 1, L_K, D), lambda qi, b, h: (b, h, 0, 0)),
                pl.BlockSpec((tq, L_K), lambda qi, b, h: (qi, 0)),
            ],
            out_specs=pl.BlockSpec((1, 1, tq, 1), lambda qi, b, h: (b, h, qi, 0)),
        ),
        compiler_params=pltpu.CompilerParams(**cp),
    )(Q, K, counts)
    return m[..., 0]                                   # (B, H, L_Q)


# -------- kernel B: in-kernel cumsum(V) + masked softmax + attn@V + vectorized scatter --------
def _ctx_kernel(qsel_ref, k_ref, v_ref, idxc_ref, idxr_ref, out_ref, *, scale):
    q = qsel_ref[0, 0].astype(jnp.bfloat16)            # (u, D)
    k = k_ref[0, 0].astype(jnp.bfloat16)               # (L_K, D)
    v = v_ref[0, 0]                                    # (L_V, D) f32
    idx_c = idxc_ref[0, 0]                             # (u, 1)  i32
    idx_r = idxr_ref[0, 0]                             # (1, u)  i32

    L_V, D = v.shape
    u = q.shape[0]
    L_K = k.shape[0]

    # _get_initial_context (mask_flag=True): cumsum(V) along the sequence.
    # Exact 0/1 lower-triangular f32 matmul on the resident V tile -> no separate
    # XLA cumsum pass and no ctx_init HBM read.
    tri_r = jax.lax.broadcasted_iota(jnp.int32, (L_V, L_V), 0)
    tri_c = jax.lax.broadcasted_iota(jnp.int32, (L_V, L_V), 1)
    tril = (tri_r >= tri_c).astype(jnp.float32)                                # (L_V, L_V)
    ctx0 = jax.lax.dot_general(tril, v, (((1,), (0,)), ((), ())),
                               preferred_element_type=jnp.float32)             # (L_V, D)

    # scaled scores of the selected (top-u) queries vs all keys: bf16 x bf16 -> f32 (MXU).
    s = jax.lax.dot_general(q, k, (((1,), (1,)), ((), ())),
                            preferred_element_type=jnp.float32) * scale        # (u, L_K)

    # ProbMask: mask key positions strictly after the original query position.
    key_pos = jax.lax.broadcasted_iota(jnp.int32, (u, L_K), 1)
    s = jnp.where(key_pos > idx_c, -jnp.inf, s)

    # softmax; the divide goes to the EUP via approximate reciprocal.
    m = jnp.max(s, axis=-1, keepdims=True)
    e = jnp.exp(s - m)
    attn = e * pl.reciprocal(jnp.sum(e, axis=-1, keepdims=True), approx=True)

    upd = jax.lax.dot_general(attn.astype(jnp.bfloat16), v.astype(jnp.bfloat16),
                              (((1,), (0,)), ((), ())),
                              preferred_element_type=jnp.float32)               # (u, D)

    # Vectorized scatter: top_k indices are distinct, so one-hot rows never collide
    # (a collision would sum instead of overwrite).  f32 0/1 one-hot keeps the moved
    # rows bit-clean copies of upd.
    row_pos = jax.lax.broadcasted_iota(jnp.int32, (L_V, u), 0)
    onehot = (row_pos == idx_r).astype(jnp.float32)                             # (L_V, u)
    scattered = jax.lax.dot_general(onehot, upd, (((1,), (0,)), ((), ())),
                                    preferred_element_type=jnp.float32)         # (L_V, D)
    selected = jnp.sum(onehot, axis=-1, keepdims=True) > 0.5                    # (L_V, 1)
    out_ref[0, 0] = jnp.where(selected, scattered, ctx0).astype(out_ref.dtype)


def _update_context(Q_sel, K, V, index, scale, *, vmem_limit_bytes=None):
    B, H, u, D = Q_sel.shape
    L_K = K.shape[2]
    L_V = V.shape[2]
    idx_c = index[..., None].astype(jnp.int32)         # (B, H, u, 1) for the causal mask
    idx_r = index[:, :, None, :].astype(jnp.int32)     # (B, H, 1, u) for the one-hot scatter
    kernel = functools.partial(_ctx_kernel, scale=scale)
    cp = dict(dimension_semantics=("parallel", "parallel"))
    if vmem_limit_bytes is not None:
        cp["vmem_limit_bytes"] = vmem_limit_bytes
    return pl.pallas_call(
        kernel,
        out_shape=jax.ShapeDtypeStruct((B, H, L_V, D), jnp.float32),
        grid_spec=pltpu.PrefetchScalarGridSpec(
            num_scalar_prefetch=0,
            grid=(B, H),
            in_specs=[
                pl.BlockSpec((1, 1, u, D), lambda b, h: (b, h, 0, 0)),     # Q_sel
                pl.BlockSpec((1, 1, L_K, D), lambda b, h: (b, h, 0, 0)),   # K
                pl.BlockSpec((1, 1, L_V, D), lambda b, h: (b, h, 0, 0)),   # V
                pl.BlockSpec((1, 1, u, 1), lambda b, h: (b, h, 0, 0)),     # idx (column form)
                pl.BlockSpec((1, 1, 1, u), lambda b, h: (b, h, 0, 0)),     # idx (row form)
            ],
            out_specs=pl.BlockSpec((1, 1, L_V, D), lambda b, h: (b, h, 0, 0)),
        ),
        compiler_params=pltpu.CompilerParams(**cp),
    )(Q_sel, K, V, idx_c, idx_r)


# --------------------------------- wrapper (forward) ---------------------------------
def prob_attention(queries, keys, values, index_sample, *, factor=5, scale=None,
                   mask_flag=True, vmem_limit_bytes=None):
    """ProbAttention.forward with mask_flag=True, output_attention=False.

    queries/keys/values: (B, L, H, D) as in the PyTorch module.
    index_sample: (L_Q, sample_k) int32 — deterministic stand-in for the
    torch.randint draw inside _prob_QK.
    """
    B, L_Q, H, D = queries.shape
    L_K = keys.shape[1]
    # TODO(synk): mask_flag=False path (mean-initialized context, no causal mask) not implemented.
    assert mask_flag and L_Q == L_K

    # (B, H, L, D) working layout keeps every Pallas block (8,128)-safe
    # (trailing (L, D) block dims equal the full array dims).
    Q = jnp.transpose(queries, (0, 2, 1, 3))
    K = jnp.transpose(keys, (0, 2, 1, 3))
    V = jnp.transpose(values, (0, 2, 1, 3))

    u = min(factor * int(ceil(log(L_Q))), L_Q)

    # Sample multiplicity matrix, shared across B and H:
    # counts[i, k] = #{ j : index_sample[i, j] == k }   (duplicates kept, like torch.randint)
    counts = jnp.sum(jax.nn.one_hot(index_sample, L_K, dtype=jnp.float32), axis=1)

    # --- _prob_QK: measurement M + top-k query selection (no (B,H,L,L) HBM tensor) ---
    M = _prob_m(Q, K, counts, vmem_limit_bytes=vmem_limit_bytes)       # (B, H, L_Q)
    _, index = jax.lax.top_k(M, u)                                     # (B, H, u)
    Q_sel = jnp.take_along_axis(Q, index[..., None], axis=2)           # (B, H, u, D) small gather

    sc = float(scale) if scale else 1.0 / sqrt(D)

    # --- _get_initial_context + _update_context fused in one kernel (cumsum in-kernel) ---
    ctx = _update_context(Q_sel, K, V, index, sc,
                          vmem_limit_bytes=vmem_limit_bytes)           # (B, H, L_Q, D)
    # output_attention=False -> attn None; the module never applies dropout to attn.
    return jnp.transpose(ctx, (0, 2, 1, 3)), None                      # (B, L_Q, H, D)


# ------------------------------ pure-JAX reference ------------------------------
def prob_attention_ref(queries, keys, values, index_sample, *, factor=5, scale=None):
    B, L_Q, H, D = queries.shape
    L_K = keys.shape[1]
    Q = jnp.transpose(queries, (0, 2, 1, 3))
    K = jnp.transpose(keys, (0, 2, 1, 3))
    V = jnp.transpose(values, (0, 2, 1, 3))
    u = min(factor * int(ceil(log(L_Q))), L_Q)
    hp = jax.lax.Precision.HIGHEST
    QK = jnp.einsum('bhqd,bhkd->bhqk', Q, K, precision=hp)
    QKs = QK[:, :, jnp.arange(L_Q)[:, None], index_sample]
    M = QKs.max(-1) - QKs.sum(-1) / L_K
    _, index = jax.lax.top_k(M, u)
    Qr = jnp.take_along_axis(Q, index[..., None], axis=2)
    sc = float(scale) if scale else 1.0 / sqrt(D)
    scores = jnp.einsum('bhud,bhkd->bhuk', Qr, K, precision=hp) * sc
    mask = jnp.arange(L_K)[None, None, None, :] > index[..., None]
    scores = jnp.where(mask, -jnp.inf, scores)
    attn = jax.nn.softmax(scores, axis=-1)
    ctx = jnp.cumsum(V, axis=2)
    upd = jnp.einsum('bhuk,bhkd->bhud', attn, V, precision=hp)
    bi = jnp.arange(B)[:, None, None]
    hi = jnp.arange(H)[None, :, None]
    ctx = ctx.at[bi, hi, index, :].set(upd)
    return jnp.transpose(ctx, (0, 2, 1, 3))


if __name__ == "__main__":
    B, L, H, D = 2, 16, 4, 32
    factor = 2                                          # -> u = U_part = 6 < L (sparse selection)

    key = jax.random.PRNGKey(0)
    kq, kk, kv, ks = jax.random.split(key, 4)
    q = jax.random.normal(kq, (B, L, H, D), jnp.float32)
    k = jax.random.normal(kk, (B, L, H, D), jnp.float32)
    v = jax.random.normal(kv, (B, L, H, D), jnp.float32)

    # deterministic replacement for torch.randint(L_K, (L_Q, sample_k))
    U_part = min(factor * int(ceil(log(L))), L)
    index_sample = jax.random.randint(ks, (L, U_part), 0, L, dtype=jnp.int32)

    fwd = jax.jit(functools.partial(prob_attention, factor=factor, scale=None))
    out, attn = fwd(q, k, v, index_sample)
    out = jax.block_until_ready(out)

    ref = prob_attention_ref(q, k, v, index_sample, factor=factor, scale=None)
    assert out.shape == (B, L, H, D)
    assert attn is None
    # Kernel B runs its score / attn@V matmuls with bf16 operands (f32 accumulation),
    # so the tolerance is relaxed vs the pure-f32 reference; the cumsum rows and the
    # one-hot scatter are exact up to f32 add ordering.
    assert jnp.allclose(out, ref, rtol=2e-2, atol=2e-2), "mismatch vs JAX reference"
    print("KERNEL_OK")
</pallas_src>

<mosaic_0001>
module attributes {stable_mosaic.version = 11 : i64} {
  func.func @_m_kernel(%arg0: i32, %arg1: i32, %arg2: i32, %arg3: memref<1x1x16x32xf32, #tpu.memory_space<vmem>>, %arg4: memref<1x1x16x32xf32, #tpu.memory_space<vmem>>, %arg5: memref<16x16xf32, #tpu.memory_space<vmem>>, %arg6: memref<1x1x16x1xf32, #tpu.memory_space<vmem>>) attributes {dimension_semantics = [#tpu.dimension_semantics<parallel>, #tpu.dimension_semantics<parallel>, #tpu.dimension_semantics<parallel>], iteration_bounds = array<i64: 1, 2, 4>, scalar_prefetch = 0 : i64, scratch_operands = 0 : i64, tpu.core_type = #tpu.core_type<tc>, window_params = [{transform_indices = @transform_0, window_bounds = array<i64: 1, 1, 16, 32>}, {transform_indices = @transform_1, window_bounds = array<i64: 1, 1, 16, 32>}, {transform_indices = @transform_2, window_bounds = array<i64: 16, 16>}, {transform_indices = @transform_3, window_bounds = array<i64: 1, 1, 16, 1>}]} {
    %c0 = arith.constant 0 : index
    %c0_0 = arith.constant 0 : index
    %c0_1 = arith.constant 0 : index
    %c0_2 = arith.constant 0 : index
    %0 = vector.load %arg3[%c0, %c0_0, %c0_1, %c0_2] : memref<1x1x16x32xf32, #tpu.memory_space<vmem>>, vector<1x1x16x32xf32>
    %1 = vector.shape_cast %0 : vector<1x1x16x32xf32> to vector<16x32xf32>
    %c0_3 = arith.constant 0 : index
    %c0_4 = arith.constant 0 : index
    %c0_5 = arith.constant 0 : index
    %c0_6 = arith.constant 0 : index
    %2 = vector.load %arg4[%c0_3, %c0_4, %c0_5, %c0_6] : memref<1x1x16x32xf32, #tpu.memory_space<vmem>>, vector<1x1x16x32xf32>
    %3 = vector.shape_cast %2 : vector<1x1x16x32xf32> to vector<16x32xf32>
    %c0_7 = arith.constant 0 : index
    %c0_8 = arith.constant 0 : index
    %4 = vector.load %arg5[%c0_7, %c0_8] : memref<16x16xf32, #tpu.memory_space<vmem>>, vector<16x16xf32>
    %cst = arith.constant dense<0.000000e+00> : vector<16x16xf32>
    %5 = tpu.matmul %1, %3, %cst {dimension_numbers = #tpu.dot_dimension_numbers<[1], [1], [0], [0], [0, 0, 1, 0], [], []>} : vector<16x32xf32>, vector<16x32xf32>, vector<16x16xf32> -> vector<16x16xf32>
    %cst_9 = arith.constant 0.000000e+00 : f32
    %6 = vector.broadcast %cst_9 : f32 to vector<16x16xf32>
    %7 = arith.cmpf ogt, %4, %6 : vector<16x16xf32>
    %cst_10 = arith.constant 0xFF800000 : f32
    %8 = vector.broadcast %cst_10 : f32 to vector<16x16xf32>
    %9 = arith.select %7, %5, %8 : vector<16x16xi1>, vector<16x16xf32>
    %cst_11 = arith.constant dense<0xFF800000> : vector<16xf32>
    %10 = vector.multi_reduction <maximumf>, %9, %cst_11 [1] : vector<16x16xf32> to vector<16xf32>
    %11 = vector.shape_cast %10 : vector<16xf32> to vector<16x1xf32>
    %12 = arith.mulf %4, %5 : vector<16x16xf32>
    %cst_12 = arith.constant dense<0.000000e+00> : vector<16xf32>
    %13 = vector.multi_reduction <add>, %12, %cst_12 [1] : vector<16x16xf32> to vector<16xf32>
    %14 = vector.shape_cast %13 : vector<16xf32> to vector<16x1xf32>
    %cst_13 = arith.constant 6.250000e-02 : f32
    %15 = vector.broadcast %cst_13 : f32 to vector<16x1xf32>
    %16 = arith.mulf %14, %15 : vector<16x1xf32>
    %17 = arith.subf %11, %16 : vector<16x1xf32>
    %c0_14 = arith.constant 0 : index
    %c0_15 = arith.constant 0 : index
    %c0_16 = arith.constant 0 : index
    %c0_17 = arith.constant 0 : index
    %18 = vector.load %arg6[%c0_14, %c0_15, %c0_16, %c0_17] : memref<1x1x16x1xf32, #tpu.memory_space<vmem>>, vector<1x1x16x1xf32>
    %19 = vector.shape_cast %18 : vector<1x1x16x1xf32> to vector<16x1xf32>
    %20 = vector.shape_cast %17 : vector<16x1xf32> to vector<1x1x16x1xf32>
    tpu.vector_store %arg6[%c0_14, %c0_15, %c0_16, %c0_17], %20 {strides = array<i32>} : memref<1x1x16x1xf32, #tpu.memory_space<vmem>>, vector<1x1x16x1xf32>,
    return
  }
  func.func @transform_0(%arg0: i32, %arg1: i32, %arg2: i32) -> (i32, i32, i32, i32) {
    %c0_i32 = arith.constant 0 : i32
    %c0_i32_0 = arith.constant 0 : i32
    return %arg1, %arg2, %arg0, %c0_i32 : i32, i32, i32, i32
  }
  func.func @transform_1(%arg0: i32, %arg1: i32, %arg2: i32) -> (i32, i32, i32, i32) {
    %c0_i32 = arith.constant 0 : i32
    %c0_i32_0 = arith.constant 0 : i32
    %c0_i32_1 = arith.constant 0 : i32
    return %arg1, %arg2, %c0_i32, %c0_i32_0 : i32, i32, i32, i32
  }
  func.func @transform_2(%arg0: i32, %arg1: i32, %arg2: i32) -> (i32, i32) {
    %c0_i32 = arith.constant 0 : i32
    %c0_i32_0 = arith.constant 0 : i32
    return %arg0, %c0_i32 : i32, i32
  }
  func.func @transform_3(%arg0: i32, %arg1: i32, %arg2: i32) -> (i32, i32, i32, i32) {
    %c0_i32 = arith.constant 0 : i32
    %c0_i32_0 = arith.constant 0 : i32
    return %arg1, %arg2, %arg0, %c0_i32 : i32, i32, i32, i32
  }
}

module attributes {stable_mosaic.version = 11 : i64} {
  func.func @_ctx_kernel(%arg0: i32, %arg1: i32, %arg2: memref<1x1x6x32xf32, #tpu.memory_space<vmem>>, %arg3: memref<1x1x16x32xf32, #tpu.memory_space<vmem>>, %arg4: memref<1x1x16x32xf32, #tpu.memory_space<vmem>>, %arg5: memref<1x1x6x1xi32, #tpu.memory_space<vmem>>, %arg6: memref<1x1x1x6xi32, #tpu.memory_space<vmem>>, %arg7: memref<1x1x16x32xf32, #tpu.memory_space<vmem>>) attributes {dimension_semantics = [#tpu.dimension_semantics<parallel>, #tpu.dimension_semantics<parallel>], iteration_bounds = array<i64: 2, 4>, scalar_prefetch = 0 : i64, scratch_operands = 0 : i64, tpu.core_type = #tpu.core_type<tc>, window_params = [{transform_indices = @transform_0, window_bounds = array<i64: 1, 1, 6, 32>}, {transform_indices = @transform_1, window_bounds = array<i64: 1, 1, 16, 32>}, {transform_indices = @transform_2, window_bounds = array<i64: 1, 1, 16, 32>}, {transform_indices = @transform_3, window_bounds = array<i64: 1, 1, 6, 1>}, {transform_indices = @transform_4, window_bounds = array<i64: 1, 1, 1, 6>}, {transform_indices = @transform_5, window_bounds = array<i64: 1, 1, 16, 32>}]} {
    %c0 = arith.constant 0 : index
    %c0_0 = arith.constant 0 : index
    %c0_1 = arith.constant 0 : index
    %c0_2 = arith.constant 0 : index
    %0 = vector.load %arg2[%c0, %c0_0, %c0_1, %c0_2] : memref<1x1x6x32xf32, #tpu.memory_space<vmem>>, vector<1x1x6x32xf32>
    %1 = vector.shape_cast %0 : vector<1x1x6x32xf32> to vector<6x32xf32>
    %2 = arith.truncf %1 : vector<6x32xf32> to vector<6x32xbf16>
    %c0_3 = arith.constant 0 : index
    %c0_4 = arith.constant 0 : index
    %c0_5 = arith.constant 0 : index
    %c0_6 = arith.constant 0 : index
    %3 = vector.load %arg3[%c0_3, %c0_4, %c0_5, %c0_6] : memref<1x1x16x32xf32, #tpu.memory_space<vmem>>, vector<1x1x16x32xf32>
    %4 = vector.shape_cast %3 : vector<1x1x16x32xf32> to vector<16x32xf32>
    %5 = arith.truncf %4 : vector<16x32xf32> to vector<16x32xbf16>
    %c0_7 = arith.constant 0 : index
    %c0_8 = arith.constant 0 : index
    %c0_9 = arith.constant 0 : index
    %c0_10 = arith.constant 0 : index
    %6 = vector.load %arg4[%c0_7, %c0_8, %c0_9, %c0_10] : memref<1x1x16x32xf32, #tpu.memory_space<vmem>>, vector<1x1x16x32xf32>
    %7 = vector.shape_cast %6 : vector<1x1x16x32xf32> to vector<16x32xf32>
    %c0_11 = arith.constant 0 : index
    %c0_12 = arith.constant 0 : index
    %c0_13 = arith.constant 0 : index
    %c0_14 = arith.constant 0 : index
    %8 = vector.load %arg5[%c0_11, %c0_12, %c0_13, %c0_14] : memref<1x1x6x1xi32, #tpu.memory_space<vmem>>, vector<1x1x6x1xi32>
    %9 = vector.shape_cast %8 : vector<1x1x6x1xi32> to vector<6x1xi32>
    %c0_15 = arith.constant 0 : index
    %c0_16 = arith.constant 0 : index
    %c0_17 = arith.constant 0 : index
    %c0_18 = arith.constant 0 : index
    %10 = vector.load %arg6[%c0_15, %c0_16, %c0_17, %c0_18] : memref<1x1x1x6xi32, #tpu.memory_space<vmem>>, vector<1x1x1x6xi32>
    %11 = vector.shape_cast %10 : vector<1x1x1x6xi32> to vector<1x6xi32>
    %12 = tpu.iota {dimensions = array<i32: 0>} : vector<16x16xi32>
    %13 = tpu.iota {dimensions = array<i32: 1>} : vector<16x16xi32>
    %14 = arith.cmpi sge, %12, %13 : vector<16x16xi32>
    %15 = arith.extui %14 : vector<16x16xi1> to vector<16x16xi32>
    %16 = arith.sitofp %15 : vector<16x16xi32> to vector<16x16xf32>
    %cst = arith.constant dense<0.000000e+00> : vector<16x32xf32>
    %17 = tpu.matmul %16, %7, %cst {dimension_numbers = #tpu.dot_dimension_numbers<[1], [0], [0], [1], [0, 0, 1, 1], [], []>} : vector<16x16xf32>, vector<16x32xf32>, vector<16x32xf32> -> vector<16x32xf32>
    %cst_19 = arith.constant dense<0.000000e+00> : vector<6x16xf32>
    %18 = tpu.matmul %2, %5, %cst_19 {dimension_numbers = #tpu.dot_dimension_numbers<[1], [1], [0], [0], [0, 0, 1, 0], [], []>} : vector<6x32xbf16>, vector<16x32xbf16>, vector<6x16xf32> -> vector<6x16xf32>
    %cst_20 = arith.constant 0.176776692 : f32
    %19 = vector.broadcast %cst_20 : f32 to vector<6x16xf32>
    %20 = arith.mulf %18, %19 : vector<6x16xf32>
    %21 = tpu.iota {dimensions = array<i32: 1>} : vector<6x16xi32>
    %22 = vector.broadcast %9 : vector<6x1xi32> to vector<6x16xi32>
    %23 = arith.cmpi sgt, %21, %22 : vector<6x16xi32>
    %cst_21 = arith.constant 0xFF800000 : f32
    %24 = vector.broadcast %cst_21 : f32 to vector<6x16xf32>
    %25 = arith.select %23, %24, %20 : vector<6x16xi1>, vector<6x16xf32>
    %cst_22 = arith.constant dense<0xFF800000> : vector<6xf32>
    %26 = vector.multi_reduction <maximumf>, %25, %cst_22 [1] : vector<6x16xf32> to vector<6xf32>
    %27 = vector.shape_cast %26 : vector<6xf32> to vector<6x1xf32>
    %28 = vector.broadcast %27 : vector<6x1xf32> to vector<6x16xf32>
    %29 = arith.subf %25, %28 : vector<6x16xf32>
    %30 = math.exp %29 : vector<6x16xf32>
    %cst_23 = arith.constant dense<0.000000e+00> : vector<6xf32>
    %31 = vector.multi_reduction <add>, %30, %cst_23 [1] : vector<6x16xf32> to vector<6xf32>
    %32 = vector.shape_cast %31 : vector<6xf32> to vector<6x1xf32>
    %33 = tpu.reciprocal %32 {approx = true} : vector<6x1xf32> -> vector<6x1xf32>
    %34 = vector.broadcast %33 : vector<6x1xf32> to vector<6x16xf32>
    %35 = arith.mulf %30, %34 : vector<6x16xf32>
    %36 = arith.truncf %35 : vector<6x16xf32> to vector<6x16xbf16>
    %37 = arith.truncf %7 : vector<16x32xf32> to vector<16x32xbf16>
    %cst_24 = arith.constant dense<0.000000e+00> : vector<6x32xf32>
    %38 = tpu.matmul %36, %37, %cst_24 {dimension_numbers = #tpu.dot_dimension_numbers<[1], [0], [0], [1], [0, 0, 1, 1], [], []>} : vector<6x16xbf16>, vector<16x32xbf16>, vector<6x32xf32> -> vector<6x32xf32>
    %39 = tpu.iota {dimensions = array<i32: 0>} : vector<16x6xi32>
    %40 = vector.broadcast %11 : vector<1x6xi32> to vector<16x6xi32>
    %41 = arith.cmpi eq, %39, %40 : vector<16x6xi32>
    %42 = arith.extui %41 : vector<16x6xi1> to vector<16x6xi32>
    %43 = arith.sitofp %42 : vector<16x6xi32> to vector<16x6xf32>
    %cst_25 = arith.constant dense<0.000000e+00> : vector<16x32xf32>
    %44 = tpu.matmul %43, %38, %cst_25 {dimension_numbers = #tpu.dot_dimension_numbers<[1], [0], [0], [1], [0, 0, 1, 1], [], []>} : vector<16x6xf32>, vector<6x32xf32>, vector<16x32xf32> -> vector<16x32xf32>
    %cst_26 = arith.constant dense<0.000000e+00> : vector<16xf32>
    %45 = vector.multi_reduction <add>, %43, %cst_26 [1] : vector<16x6xf32> to vector<16xf32>
    %46 = vector.shape_cast %45 : vector<16xf32> to vector<16x1xf32>
    %cst_27 = arith.constant 5.000000e-01 : f32
    %47 = vector.broadcast %cst_27 : f32 to vector<16x1xf32>
    %48 = arith.cmpf ogt, %46, %47 : vector<16x1xf32>
    %49 = vector.shape_cast %48 : vector<16x1xi1> to vector<16x1xi1>
    %50 = vector.broadcast %49 : vector<16x1xi1> to vector<16x32xi1>
    %51 = arith.select %50, %44, %17 : vector<16x32xi1>, vector<16x32xf32>
    %c0_28 = arith.constant 0 : index
    %c0_29 = arith.constant 0 : index
    %c0_30 = arith.constant 0 : index
    %c0_31 = arith.constant 0 : index
    %52 = vector.load %arg7[%c0_28, %c0_29, %c0_30, %c0_31] : memref<1x1x16x32xf32, #tpu.memory_space<vmem>>, vector<1x1x16x32xf32>
    %53 = vector.shape_cast %52 : vector<1x1x16x32xf32> to vector<16x32xf32>
    %54 = vector.shape_cast %51 : vector<16x32xf32> to vector<1x1x16x32xf32>
    tpu.vector_store %arg7[%c0_28, %c0_29, %c0_30, %c0_31], %54 {strides = array<i32>} : memref<1x1x16x32xf32, #tpu.memory_space<vmem>>, vector<1x1x16x32xf32>,
    return
  }
  func.func @transform_0(%arg0: i32, %arg1: i32) -> (i32, i32, i32, i32) {
    %c0_i32 = arith.constant 0 : i32
    %c0_i32_0 = arith.constant 0 : i32
    %c0_i32_1 = arith.constant 0 : i32
    return %arg0, %arg1, %c0_i32, %c0_i32_0 : i32, i32, i32, i32
  }
  func.func @transform_1(%arg0: i32, %arg1: i32) -> (i32, i32, i32, i32) {
    %c0_i32 = arith.constant 0 : i32
    %c0_i32_0 = arith.constant 0 : i32
    %c0_i32_1 = arith.constant 0 : i32
    return %arg0, %arg1, %c0_i32, %c0_i32_0 : i32, i32, i32, i32
  }
  func.func @transform_2(%arg0: i32, %arg1: i32) -> (i32, i32, i32, i32) {
    %c0_i32 = arith.constant 0 : i32
    %c0_i32_0 = arith.constant 0 : i32
    %c0_i32_1 = arith.constant 0 : i32
    return %arg0, %arg1, %c0_i32, %c0_i32_0 : i32, i32, i32, i32
  }
  func.func @transform_3(%arg0: i32, %arg1: i32) -> (i32, i32, i32, i32) {
    %c0_i32 = arith.constant 0 : i32
    %c0_i32_0 = arith.constant 0 : i32
    %c0_i32_1 = arith.constant 0 : i32
    return %arg0, %arg1, %c0_i32, %c0_i32_0 : i32, i32, i32, i32
  }
  func.func @transform_4(%arg0: i32, %arg1: i32) -> (i32, i32, i32, i32) {
    %c0_i32 = arith.constant 0 : i32
    %c0_i32_0 = arith.constant 0 : i32
    %c0_i32_1 = arith.constant 0 : i32
    return %arg0, %arg1, %c0_i32, %c0_i32_0 : i32, i32, i32, i32
  }
  func.func @transform_5(%arg0: i32, %arg1: i32) -> (i32, i32, i32, i32) {
    %c0_i32 = arith.constant 0 : i32
    %c0_i32_0 = arith.constant 0 : i32
    %c0_i32_1 = arith.constant 0 : i32
    return %arg0, %arg1, %c0_i32, %c0_i32_0 : i32, i32, i32, i32
  }
}

</mosaic_0001>

<llo_original>
// kernel: prob_attention.2
$region0: #{prob_attention.2}
  #allocation0 [shape = 'u32[]', space=smem, size = 0x4, offset = 0x4, fixed_abs, tag = 'smem constant byte address 0x4 - core index']
  #allocation1 [shape = 'u32[144,128]{1,0:T(1,128)}', space=vmem, size = 0x12000, scoped, tag = 'internal scratch']
  %s0 = inlined_call_operand.vmem [shape: f32[2,4,16,32], index: 0, kind: input, shape index: {}]
  %s1 = inlined_call_operand.vmem [shape: f32[2,4,16,32], index: 1, kind: input, shape index: {}]
  %s2 = inlined_call_operand.vmem [shape: f32[16,16], index: 2, kind: input, shape index: {}]
  %s3 = inlined_call_operand.vmem [shape: f32[2,4,16,1], index: 3, kind: output, shape index: {}]
  %s4 = sld [smem:[#allocation0]]
  $region45: #{prob_attention.2} parent=0
    _
  %s6 = ssub.s32 1, %s4
  %s7 = scalar_select 0, %s6, %s4
  loop: start=0, step=1, limit=10
  $region2: #{prob_attention.2} parent=0 // loop_pre_header
    _
  $region3: #{prob_attention.2} parent=0 // loop_header
    %s9 = sphi 0, %s13
    %p10 = scmp.ge.s32.totalorder %s9, 10
    %s16 = sphi 0, %s35
    %s17 = sphi 0, %s31
    %s18 = sphi 0, %s27
    %s19 = sphi 0, %s16
    %s20 = sphi 0, %s17
    %s21 = sphi 0, %s18
    %s22 = sphi 0, %s19
    %s23 = sphi 0, %s20
    %s24 = sphi 0, %s21
    %s42 = sphi 0, %s44
    %s45 = sphi 0, %s42
    %s46 = sphi 0, %s45
    %s62 = sphi 0, %s46
    %s70 = sphi 0, %s72
    %s73 = sphi 0, %s70
    %s74 = sphi 0, %s73
    %s90 = sphi 0, %s74
    %s96 = sphi 0, %s98
    %s99 = sphi 0, %s96
    %s100 = sphi 0, %s99
    %s116 = sphi 0, %s100
    %s126 = sphi 0, %s128
    %s129 = sphi 0, %s126
    %s130 = sphi 0, %s129
    %s146 = sphi 0, %s130
  $region4: #{prob_attention.2} parent=0 // loop_header_branch
    %12 = sbr.rel (%p10) target = $region8
  $region5: #{prob_attention.2} parent=0 // loop_body
    %s14 = ssub.s32 %s9, 1
    %s15 = ssub.s32 %s9, 2
    %s25 = sadd.s32 1, %s18
    %p26 = scmp.ge.s32.totalorder %s25, 4
    %s27 = scalar_select %p26, 0, %s25
    %s28 = sadd.s32 1, %s17
    %s29 = scalar_select %p26, %s28, %s17
    %p30 = scmp.ge.s32.totalorder %s29, 2
    %s31 = scalar_select %p30, 0, %s29
    %s32 = sadd.s32 1, %s16
    %s33 = scalar_select %p30, %s32, %s16
    %p34 = scmp.ge.s32.totalorder %s33, 1
    %s35 = scalar_select %p34, 0, %s33
    %s36 = ssub.s32 %s17, %s31
    %s37 = ssub.s32 %s18, %s27
    %s38 = sor.u32 %s36, %s37
    %s39 = ssub.s32 %s16, %s35
    %s40 = sor.u32 %s38, %s39
    %p41 = scmp.eq.s32.totalorder %s40, 0
    %s43 = sadd.s32 %s42, 1
    %s44 = scalar_select %p41, %s42, %s43
    %p47 = pneg %p41
    %p48 = scmp.eq.s32.totalorder %s9, 7
    %p49 = por %p47, %p48
    %p50 = scmp.ne.s32.totalorder %s42, %s45
    %p51 = scmp.eq.s32.totalorder %s9, 0
    %p52 = por %p50, %p51
    %p53 = scmp.ne.s32.totalorder %s42, %s45
    %p54 = scmp.eq.s32.totalorder %s14, 7
    %p55 = por %p53, %p54
    %p56 = scmp.ne.s32.totalorder %s45, %s46
    %p57 = scmp.eq.s32.totalorder %s14, 0
    %p58 = por %p56, %p57
    %p59 = scmp.ne.s32.totalorder %s45, %s46
    %p60 = scmp.eq.s32.totalorder %s15, 7
    %p61 = por %p59, %p60
    %p63 = scmp.ne.s32.totalorder %s46, %s62
    %p64 = scmp.eq.s32.totalorder %s15, 0
    %p65 = por %p63, %p64
    %s66 = ssub.s32 %s17, %s31
    %s67 = ssub.s32 %s18, %s27
    %s68 = sor.u32 %s66, %s67
    %p69 = scmp.eq.s32.totalorder %s68, 0
    %s71 = sadd.s32 %s70, 1
    %s72 = scalar_select %p69, %s70, %s71
    %p75 = pneg %p69
    %p76 = scmp.eq.s32.totalorder %s9, 7
    %p77 = por %p75, %p76
    %p78 = scmp.ne.s32.totalorder %s70, %s73
    %p79 = scmp.eq.s32.totalorder %s9, 0
    %p80 = por %p78, %p79
    %p81 = scmp.ne.s32.totalorder %s70, %s73
    %p82 = scmp.eq.s32.totalorder %s14, 7
    %p83 = por %p81, %p82
    %p84 = scmp.ne.s32.totalorder %s73, %s74
    %p85 = scmp.eq.s32.totalorder %s14, 0
    %p86 = por %p84, %p85
    %p87 = scmp.ne.s32.totalorder %s73, %s74
    %p88 = scmp.eq.s32.totalorder %s15, 7
    %p89 = por %p87, %p88
    %p91 = scmp.ne.s32.totalorder %s74, %s90
    %p92 = scmp.eq.s32.totalorder %s15, 0
    %p93 = por %p91, %p92
    %s94 = ssub.s32 %s16, %s35
    %p95 = scmp.eq.s32.totalorder %s94, 0
    %s97 = sadd.s32 %s96, 1
    %s98 = scalar_select %p95, %s96, %s97
    %p101 = pneg %p95
    %p102 = scmp.eq.s32.totalorder %s9, 7
    %p103 = por %p101, %p102
    %p104 = scmp.ne.s32.totalorder %s96, %s99
    %p105 = scmp.eq.s32.totalorder %s9, 0
    %p106 = por %p104, %p105
    %p107 = scmp.ne.s32.totalorder %s96, %s99
    %p108 = scmp.eq.s32.totalorder %s14, 7
    %p109 = por %p107, %p108
    %p110 = scmp.ne.s32.totalorder %s99, %s100
    %p111 = scmp.eq.s32.totalorder %s14, 0
    %p112 = por %p110, %p111
    %p113 = scmp.ne.s32.totalorder %s99, %s100
    %p114 = scmp.eq.s32.totalorder %s15, 7
    %p115 = por %p113, %p114
    %p117 = scmp.ne.s32.totalorder %s100, %s116
    %p118 = scmp.eq.s32.totalorder %s15, 0
    %p119 = por %p117, %p118
    %s120 = ssub.s32 %s17, %s31
    %s121 = ssub.s32 %s18, %s27
    %s122 = sor.u32 %s120, %s121
    %s123 = ssub.s32 %s16, %s35
    %s124 = sor.u32 %s122, %s123
    %p125 = scmp.eq.s32.totalorder %s124, 0
    %s127 = sadd.s32 %s126, 1
    %s128 = scalar_select %p125, %s126, %s127
    %p131 = pneg %p125
    %p132 = scmp.eq.s32.totalorder %s9, 7
    %p133 = por %p131, %p132
    %p134 = scmp.ne.s32.totalorder %s126, %s129
    %p135 = scmp.eq.s32.totalorder %s9, 0
    %p136 = por %p134, %p135
    %p137 = scmp.ne.s32.totalorder %s126, %s129
    %p138 = scmp.eq.s32.totalorder %s14, 7
    %p139 = por %p137, %p138
    %p140 = scmp.ne.s32.totalorder %s129, %s130
    %p141 = scmp.eq.s32.totalorder %s14, 0
    %p142 = por %p140, %p141
    %p143 = scmp.ne.s32.totalorder %s129, %s130
    %p144 = scmp.eq.s32.totalorder %s15, 7
    %p145 = por %p143, %p144
    %p147 = scmp.ne.s32.totalorder %s130, %s146
    %p148 = scmp.eq.s32.totalorder %s15, 0
    %p149 = por %p147, %p148
    %p150 = scmp.le.s32.totalorder 1, %s9
    %p151 = scmp.lt.s32.totalorder %s9, 9
    %p152 = pnand %p150, %p151
    %p153 = pneg %p152
    // Predicated region
    $region9: #{prob_attention.2} parent=5 // pred_check
      _
    $region10: #{prob_attention.2} parent=5 // pred_check_branch
      %155 = sbr.rel (%p152) target = $region12
    $region11: #{prob_attention.2} parent=5 // pred_region
      %s156 = ssub.s32 %s9, 1
      // Predicated region
      $region13: #{prob_attention.2} parent=11 // pred_check
        %p157 = pneg %p112
      $region14: #{prob_attention.2} parent=11 // pred_check_branch
        %159 = sbr.rel (%p157) target = $region16
      $region15: #{prob_attention.2} parent=11 // pred_region
        %s160 = smul.u32 2, %s19
        %p161 = scmp.lt.s32.totalorder %s160, 1
        %s162 = scalar_select %p161, %s160, 1
        %s163 = smul.addr %s162, 8
        %s164 = scalar_lea.vmem %s2, %s163
        %s165 = smul.u32 2, %s19
      $region16: #{prob_attention.2} parent=11 // pred_fallthru
        _
    $region12: #{prob_attention.2} parent=5 // pred_fallthru
      _
    %p166 = scmp.lt.s32.totalorder %s9, 8
    // Predicated region
    $region17: #{prob_attention.2} parent=5 // pred_check
      %p167 = pneg %p166
    $region18: #{prob_attention.2} parent=5 // pred_check_branch
      %169 = sbr.rel (%p167) target = $region20
    $region19: #{prob_attention.2} parent=5 // pred_region
      // Predicated region
      $region21: #{prob_attention.2} parent=19 // pred_check
        %p170 = pneg %p52
      $region22: #{prob_attention.2} parent=19 // pred_check_branch
        %172 = sbr.rel (%p170) target = $region24
      $region23: #{prob_attention.2} parent=19 // pred_region
        %s173 = smul.u32 2, %s16
        %p174 = scmp.lt.s32.totalorder %s17, 1
        %s175 = scalar_select %p174, %s17, 1
        %p176 = scmp.lt.s32.totalorder %s18, 3
        %s177 = scalar_select %p176, %s18, 3
        %p178 = scmp.lt.s32.totalorder %s173, 1
        %s179 = scalar_select %p178, %s173, 1
        %s180 = smul.addr %s177, 2
        %s181 = sadd.s32 %s179, %s180
        %s182 = smul.addr %s175, 8
        %s183 = sadd.s32 %s181, %s182
        %s184 = smul.addr %s183, 8
        %s185 = scalar_lea.vmem %s0, %s184
        %s186 = smul.u32 2, %s16
      $region24: #{prob_attention.2} parent=19 // pred_fallthru
        _
      // Predicated region
      $region25: #{prob_attention.2} parent=19 // pred_check
        %p187 = pneg %p80
      $region26: #{prob_attention.2} parent=19 // pred_check_branch
        %189 = sbr.rel (%p187) target = $region28
      $region27: #{prob_attention.2} parent=19 // pred_region
        %p190 = scmp.lt.s32.totalorder %s17, 1
        %s191 = scalar_select %p190, %s17, 1
        %p192 = scmp.lt.s32.totalorder %s18, 3
        %s193 = scalar_select %p192, %s18, 3
        %s194 = smul.addr %s193, 2
        %s195 = smul.addr %s191, 8
        %s196 = sadd.s32 %s194, %s195
        %s197 = smul.addr %s196, 8
        %s198 = scalar_lea.vmem %s1, %s197
      $region28: #{prob_attention.2} parent=19 // pred_fallthru
        _
    $region20: #{prob_attention.2} parent=5 // pred_fallthru
      _
    %p199 = scmp.le.s32.totalorder 1, %s9
    %p200 = scmp.lt.s32.totalorder %s9, 9
    %p201 = pnand %p199, %p200
    %p202 = pneg %p201
    // Predicated region
    $region29: #{prob_attention.2} parent=5 // pred_check
      _
    $region30: #{prob_attention.2} parent=5 // pred_check_branch
      %204 = sbr.rel (%p201) target = $region32
    $region31: #{prob_attention.2} parent=5 // pred_region
      %s205 = ssub.s32 %s9, 1
      %s206 = smul.u32 2, %s19
      %p207 = scmp.lt.s32.totalorder %s20, 1
      %s208 = scalar_select %p207, %s20, 1
      %p209 = scmp.lt.s32.totalorder %s21, 3
      %s210 = scalar_select %p209, %s21, 3
      %p211 = scmp.lt.s32.totalorder %s206, 1
      %s212 = scalar_select %p211, %s206, 1
      %s213 = smul.addr %s210, 2
      %s214 = sadd.s32 %s212, %s213
      %s215 = smul.addr %s208, 8
      %s216 = sadd.s32 %s214, %s215
      %s217 = smul.addr %s216, 8
      %s218 = scalar_lea.vmem %s0, %s217
      %p219 = pneg %p58
      %p220 = pneg %p55
      %p221 = scmp.lt.s32.totalorder %s20, 1
      %s222 = scalar_select %p221, %s20, 1
      %p223 = scmp.lt.s32.totalorder %s21, 3
      %s224 = scalar_select %p223, %s21, 3
      %s225 = smul.addr %s224, 2
      %s226 = smul.addr %s222, 8
      %s227 = sadd.s32 %s225, %s226
      %s228 = smul.addr %s227, 8
      %s229 = scalar_lea.vmem %s1, %s228
      %p230 = pneg %p86
      %p231 = pneg %p83
      %s232 = smul.u32 2, %s19
      %p233 = scmp.lt.s32.totalorder %s232, 1
      %s234 = scalar_select %p233, %s232, 1
      %s235 = smul.addr %s234, 8
      %s236 = scalar_lea.vmem %s2, %s235
      %p237 = pneg %p112
      %p238 = pneg %p109
      %p239 = pneg %p142
      %p240 = pneg %p139
      %s241 = smul.u32 2, %s19
      %p242 = scmp.lt.s32.totalorder %s20, 1
      %s243 = scalar_select %p242, %s20, 1
      %p244 = scmp.lt.s32.totalorder %s21, 3
      %s245 = scalar_select %p244, %s21, 3
      %p246 = scmp.lt.s32.totalorder %s241, 1
      %s247 = scalar_select %p246, %s241, 1
      %s248 = smul.addr %s245, 2
      %s249 = sadd.s32 %s247, %s248
      %s250 = smul.addr %s243, 8
      %s251 = sadd.s32 %s249, %s250
      %s252 = smul.addr %s251, 8
      %s253 = scalar_lea.vmem %s3, %s252
      %s254 = smul.u32 2, %s19
      %p255 = scmp.lt.s32.totalorder %s20, 1
      %s256 = scalar_select %p255, %s20, 1
      %p257 = scmp.lt.s32.totalorder %s21, 3
      %s258 = scalar_select %p257, %s21, 3
      %p259 = scmp.lt.s32.totalorder %s254, 1
      %s260 = scalar_select %p259, %s254, 1
      %s261 = smul.addr %s258, 2
      %s262 = sadd.s32 %s260, %s261
      %s263 = smul.addr %s256, 8
      %s264 = sadd.s32 %s262, %s263
      %s265 = smul.addr %s264, 8
      %s266 = scalar_lea.vmem %s0, %s265
      %s267 = smul.u32 2, %s19
      %p268 = scmp.lt.s32.totalorder %s20, 1
      %s269 = scalar_select %p268, %s20, 1
      %p270 = scmp.lt.s32.totalorder %s21, 3
      %s271 = scalar_select %p270, %s21, 3
      %s272 = smul.addr %s271, 2
      %s273 = smul.addr %s269, 8
      %s274 = sadd.s32 %s272, %s273
      %s275 = smul.addr %s274, 8
      %s276 = scalar_lea.vmem %s1, %s275
      %s277 = smul.u32 2, %s19
      %p278 = scmp.lt.s32.totalorder %s277, 1
      %s279 = scalar_select %p278, %s277, 1
      %s280 = smul.addr %s279, 8
      %s281 = scalar_lea.vmem %s2, %s280
      %s282 = smul.u32 2, %s19
      %s283 = smul.u32 2, %s19
      %p284 = scmp.lt.s32.totalorder %s20, 1
      %s285 = scalar_select %p284, %s20, 1
      %p286 = scmp.lt.s32.totalorder %s21, 3
      %s287 = scalar_select %p286, %s21, 3
      %p288 = scmp.lt.s32.totalorder %s283, 1
      %s289 = scalar_select %p288, %s283, 1
      %s290 = smul.addr %s287, 2
      %s291 = sadd.s32 %s289, %s290
      %s292 = smul.addr %s285, 8
      %s293 = sadd.s32 %s291, %s292
      %s294 = smul.addr %s293, 8
      %s295 = scalar_lea.vmem %s3, %s294
      %s296 = smul.u32 2, %s19
      %v297 = vld [vmem:[%s266] sm:$0xff]
      %v298 = vld [vmem:[%s266 + $0x8] sm:$0xff]
      %v299 = vld [vmem:[%s276] sm:$0xff]
      %v300 = vld [vmem:[%s276 + $0x8] sm:$0xff]
      %v301 = vld [vmem:[%s281] sm:$0xff]
      %v302 = vld [vmem:[%s281 + $0x8] sm:$0xff]
      %vm303 = vcmask 261120
      %v305 = vsel %vm303, %v297, 0
      %v308 = vsel %vm303, %v298, 0
      %v311 = vsel %vm303, %v299, 0
      %v314 = vsel %vm303, %v300, 0
      %316 = vmatprep.subr.mxu0 0.0
      %317 = vmatpush1.xpose.msra.mxu0 %v311
      %318 = vmatprep.subr.mxu0 0.0
      %319 = vmatpush1.xpose.msra.mxu0 %v314
      %320 = vmatprep.subr.mxu0 0.0
      %321 = vmatpush1.xpose.msra.mxu0 0.0
      %322 = vmatprep.subr.mxu0 0.0
      %323 = vmatpush1.xpose.msra.mxu0 0.0
      %324 = vmatprep.subr.mxu0 0.0
      %325 = vmatpush1.xpose.msra.mxu0 0.0
      %326 = vmatprep.subr.mxu0 0.0
      %327 = vmatpush1.xpose.msra.mxu0 0.0
      %328 = vmatprep.subr.mxu0 0.0
      %329 = vmatpush1.xpose.msra.mxu0 0.0
      %330 = vmatprep.subr.mxu0 0.0
      %331 = vmatpush1.xpose.msra.mxu0 0.0
      %332 = vmatprep.subr.mxu0 0.0
      %333 = vmatpush1.xpose.msra.mxu0 0.0
      %334 = vmatprep.subr.mxu0 0.0
      %335 = vmatpush1.xpose.msra.mxu0 0.0
      %336 = vmatprep.subr.mxu0 0.0
      %337 = vmatpush1.xpose.msra.mxu0 0.0
      %338 = vmatprep.subr.mxu0 0.0
      %339 = vmatpush1.xpose.msra.mxu0 0.0
      %340 = vmatprep.subr.mxu0 0.0
      %341 = vmatpush1.xpose.msra.mxu0 0.0
      %342 = vmatprep.subr.mxu0 0.0
      %343 = vmatpush1.xpose.msra.mxu0 0.0
      %344 = vmatprep.subr.mxu0 0.0
      %345 = vmatpush1.xpose.msra.mxu0 0.0
      %346 = vmatprep.subr.mxu0 0.0
      %347 = vmatpush1.xpose.msra.mxu0 0.0
      %348 = vmatprep.subr.mxu0 0.0
      %349 = vmatpush1.xpose.msra.mxu0 0.0
      %350 = vmatprep.subr.mxu0 0.0
      %351 = vmatpush1.xpose.msra.mxu0 0.0
      %352 = vmatprep.subr.mxu0 0.0
      %353 = vmatpush1.xpose.msra.mxu0 0.0
      %354 = vmatprep.subr.mxu0 0.0
      %355 = vmatpush1.xpose.msra.mxu0 0.0
      %356 = vmatprep.subr.mxu0 0.0
      %357 = vmatpush1.xpose.msra.mxu0 0.0
      %358 = vmatprep.subr.mxu0 0.0
      %359 = vmatpush1.xpose.msra.mxu0 0.0
      %360 = vmatprep.subr.mxu0 0.0
      %361 = vmatpush1.xpose.msra.mxu0 0.0
      %362 = vmatprep.subr.mxu0 0.0
      %363 = vmatpush1.xpose.msra.mxu0 0.0
      %364 = vmatprep.subr.mxu0 0.0
      %365 = vmatpush1.xpose.msra.mxu0 0.0
      %366 = vmatprep.subr.mxu0 0.0
      %367 = vmatpush1.xpose.msra.mxu0 0.0
      %368 = vmatprep.subr.mxu0 0.0
      %369 = vmatpush1.xpose.msra.mxu0 0.0
      %370 = vmatprep.subr.mxu0 0.0
      %371 = vmatpush1.xpose.msra.mxu0 0.0
      %372 = vmatprep.subr.mxu0 0.0
      %373 = vmatpush1.xpose.msra.mxu0 0.0
      %374 = vmatprep.subr.mxu0 0.0
      %375 = vmatpush1.xpose.msra.mxu0 0.0
      %376 = vmatprep.subr.mxu0 0.0
      %377 = vmatpush1.xpose.msra.mxu0 0.0
      %378 = vmatprep.subr.mxu0 0.0
      %379 = vmatpush1.xpose.msra.mxu0 0.0
      %380 = vmatprep.mubr.f32.mxu0 0.0
      %381 = vmatmul.mubr.f32.gmra.mrb[0].mxu0 %v305
      %v382 = vpop.f32.mrb[0].mxu0
      %v383 = vadd.f32 0.0, %v382
      %v384 = vpop.f32.mrb[0].mxu0
      %385 = vmatprep.mubr.f32.mxu0 0.0
      %386 = vmatmul.mubr.f32.gmra.mrb[0].mxu0 %v308
      %v387 = vpop.f32.mrb[0].mxu0
      %v388 = vadd.f32 0.0, %v387
      %v389 = vpop.f32.mrb[0].mxu0
      %390 = vdwg.mxu0
      %vm391 = vcmp.gt.f32.partialorder %v301, 0.0
      %vm392 = vcmp.gt.f32.partialorder %v302, 0.0
      %v393 = vsel %vm391, %v383, -inf
      %v394 = vsel %vm392, %v388, -inf
      %vm395 = vcmask 130048
      %v396 = vsel %vm395, %v393, -inf
      %397 = vmax.xlane.f32.xlu0 %v396
      %v398 = vpop.xlane.xlu0 %397
      %v399 = vsel %vm395, %v394, -inf
      %400 = vmax.xlane.f32.xlu0 %v399
      %v401 = vpop.xlane.xlu0 %400
      %v402 = vmul.f32 %v301, %v383
      %v403 = vmul.f32 %v302, %v388
      %v404 = vsel %vm395, %v402, 0.0
      %405 = vadd.xlane.f32.xlu0 %v404
      %v406 = vpop.xlane.xlu0 %405
      %v407 = vsel %vm395, %v403, 0.0
      %408 = vadd.xlane.f32.xlu0 %v407
      %v409 = vpop.xlane.xlu0 %408
      %v410 = vmul.f32 %v406, 0.0625
      %v411 = vmul.f32 %v409, 0.0625
      %v412 = vsub.f32 %v398, %v410
      %v413 = vsub.f32 %v401, %v411
      %vm414 = vcmask 7168
      %415 = vst.msk [vmem:[%s295] sm:$0xff] %vm414, %v412
      %416 = vst.msk [vmem:[%s295 + $0x8] sm:$0xff] %vm414, %v413
      %s417 = smul.u32 2, %s19
      %p418 = scmp.lt.s32.totalorder %s20, 1
      %s419 = scalar_select %p418, %s20, 1
      %p420 = scmp.lt.s32.totalorder %s21, 3
      %s421 = scalar_select %p420, %s21, 3
      %p422 = scmp.lt.s32.totalorder %s417, 1
      %s423 = scalar_select %p422, %s417, 1
      %s424 = smul.addr %s421, 2
      %s425 = sadd.s32 %s423, %s424
      %s426 = smul.addr %s419, 8
      %s427 = sadd.s32 %s425, %s426
      %s428 = smul.addr %s427, 8
      %s429 = scalar_lea.vmem %s3, %s428
      // Predicated region
      $region33: #{prob_attention.2} parent=31 // pred_check
        %p430 = pneg %p139
      $region34: #{prob_attention.2} parent=31 // pred_check_branch
        %432 = sbr.rel (%p430) target = $region36
      $region35: #{prob_attention.2} parent=31 // pred_region
        %s433 = smul.u32 2, %s19
      $region36: #{prob_attention.2} parent=31 // pred_fallthru
        _
    $region32: #{prob_attention.2} parent=5 // pred_fallthru
      _
    %p434 = scmp.le.s32.totalorder 2, %s9
    // Predicated region
    $region37: #{prob_attention.2} parent=5 // pred_check
      %p435 = pneg %p434
    $region38: #{prob_attention.2} parent=5 // pred_check_branch
      %437 = sbr.rel (%p435) target = $region40
    $region39: #{prob_attention.2} parent=5 // pred_region
      %s438 = ssub.s32 %s9, 2
      // Predicated region
      $region41: #{prob_attention.2} parent=39 // pred_check
        %p439 = pneg %p145
      $region42: #{prob_attention.2} parent=39 // pred_check_branch
        %441 = sbr.rel (%p439) target = $region44
      $region43: #{prob_attention.2} parent=39 // pred_region
        %s442 = smul.u32 2, %s22
        %p443 = scmp.lt.s32.totalorder %s23, 1
        %s444 = scalar_select %p443, %s23, 1
        %p445 = scmp.lt.s32.totalorder %s24, 3
        %s446 = scalar_select %p445, %s24, 3
        %p447 = scmp.lt.s32.totalorder %s442, 1
        %s448 = scalar_select %p447, %s442, 1
        %s449 = smul.addr %s446, 2
        %s450 = sadd.s32 %s448, %s449
        %s451 = smul.addr %s444, 8
        %s452 = sadd.s32 %s450, %s451
        %s453 = smul.addr %s452, 8
        %s454 = scalar_lea.vmem %s3, %s453
      $region44: #{prob_attention.2} parent=39 // pred_fallthru
        _
    $region40: #{prob_attention.2} parent=5 // pred_fallthru
      _
  $region6: #{prob_attention.2} parent=0 // loop_footer
    %s13 = sadd.s32 1, %s9
  $region7: #{prob_attention.2} parent=0 // loop_footer_branch
    %8 = sbr.rel target = $region3
  $region8: #{prob_attention.2} parent=0 // loop_exit
    _

// kernel: prob_attention.3
$region0: #{prob_attention.3}
  #allocation0 [shape = 'u32[]', space=smem, size = 0x4, offset = 0x4, fixed_abs, tag = 'smem constant byte address 0x4 - core index']
  #allocation1 [shape = 'u32[144,128]{1,0:T(1,128)}', space=vmem, size = 0x12000, scoped, tag = 'internal scratch']
  %s0 = inlined_call_operand.vmem [shape: f32[2,4,6,32], index: 0, kind: input, shape index: {}]
  %s1 = inlined_call_operand.vmem [shape: f32[2,4,16,32], index: 1, kind: input, shape index: {}]
  %s2 = inlined_call_operand.vmem [shape: f32[2,4,16,32], index: 2, kind: input, shape index: {}]
  %s3 = inlined_call_operand.vmem [shape: s32[2,4,6,1], index: 3, kind: input, shape index: {}]
  %s4 = inlined_call_operand.vmem [shape: s32[2,4,1,6], index: 4, kind: input, shape index: {}]
  %s5 = inlined_call_operand.vmem [shape: f32[2,4,16,32], index: 5, kind: output, shape index: {}]
  %s6 = sld [smem:[#allocation0]]
  $region53: #{prob_attention.3} parent=0
    _
  %s8 = ssub.s32 1, %s6
  %s9 = scalar_select 0, %s8, %s6
  loop: start=0, step=1, limit=10
  $region2: #{prob_attention.3} parent=0 // loop_pre_header
    _
  $region3: #{prob_attention.3} parent=0 // loop_header
    %s11 = sphi 0, %s15
    %p12 = scmp.ge.s32.totalorder %s11, 10
    %s18 = sphi 0, %s30
    %s19 = sphi 0, %s26
    %s20 = sphi 0, %s18
    %s21 = sphi 0, %s19
    %s22 = sphi 0, %s20
    %s23 = sphi 0, %s21
    %s35 = sphi 0, %s37
    %s38 = sphi 0, %s35
    %s39 = sphi 0, %s38
    %s55 = sphi 0, %s39
    %s63 = sphi 0, %s65
    %s66 = sphi 0, %s63
    %s67 = sphi 0, %s66
    %s83 = sphi 0, %s67
    %s91 = sphi 0, %s93
    %s94 = sphi 0, %s91
    %s95 = sphi 0, %s94
    %s111 = sphi 0, %s95
    %s119 = sphi 0, %s121
    %s122 = sphi 0, %s119
    %s123 = sphi 0, %s122
    %s139 = sphi 0, %s123
    %s147 = sphi 0, %s149
    %s150 = sphi 0, %s147
    %s151 = sphi 0, %s150
    %s167 = sphi 0, %s151
    %s175 = sphi 0, %s177
    %s178 = sphi 0, %s175
    %s179 = sphi 0, %s178
    %s195 = sphi 0, %s179
  $region4: #{prob_attention.3} parent=0 // loop_header_branch
    %14 = sbr.rel (%p12) target = $region8
  $region5: #{prob_attention.3} parent=0 // loop_body
    %s16 = ssub.s32 %s11, 1
    %s17 = ssub.s32 %s11, 2
    %s24 = sadd.s32 1, %s19
    %p25 = scmp.ge.s32.totalorder %s24, 4
    %s26 = scalar_select %p25, 0, %s24
    %s27 = sadd.s32 1, %s18
    %s28 = scalar_select %p25, %s27, %s18
    %p29 = scmp.ge.s32.totalorder %s28, 2
    %s30 = scalar_select %p29, 0, %s28
    %s31 = ssub.s32 %s18, %s30
    %s32 = ssub.s32 %s19, %s26
    %s33 = sor.u32 %s31, %s32
    %p34 = scmp.eq.s32.totalorder %s33, 0
    %s36 = sadd.s32 %s35, 1
    %s37 = scalar_select %p34, %s35, %s36
    %p40 = pneg %p34
    %p41 = scmp.eq.s32.totalorder %s11, 7
    %p42 = por %p40, %p41
    %p43 = scmp.ne.s32.totalorder %s35, %s38
    %p44 = scmp.eq.s32.totalorder %s11, 0
    %p45 = por %p43, %p44
    %p46 = scmp.ne.s32.totalorder %s35, %s38
    %p47 = scmp.eq.s32.totalorder %s16, 7
    %p48 = por %p46, %p47
    %p49 = scmp.ne.s32.totalorder %s38, %s39
    %p50 = scmp.eq.s32.totalorder %s16, 0
    %p51 = por %p49, %p50
    %p52 = scmp.ne.s32.totalorder %s38, %s39
    %p53 = scmp.eq.s32.totalorder %s17, 7
    %p54 = por %p52, %p53
    %p56 = scmp.ne.s32.totalorder %s39, %s55
    %p57 = scmp.eq.s32.totalorder %s17, 0
    %p58 = por %p56, %p57
    %s59 = ssub.s32 %s18, %s30
    %s60 = ssub.s32 %s19, %s26
    %s61 = sor.u32 %s59, %s60
    %p62 = scmp.eq.s32.totalorder %s61, 0
    %s64 = sadd.s32 %s63, 1
    %s65 = scalar_select %p62, %s63, %s64
    %p68 = pneg %p62
    %p69 = scmp.eq.s32.totalorder %s11, 7
    %p70 = por %p68, %p69
    %p71 = scmp.ne.s32.totalorder %s63, %s66
    %p72 = scmp.eq.s32.totalorder %s11, 0
    %p73 = por %p71, %p72
    %p74 = scmp.ne.s32.totalorder %s63, %s66
    %p75 = scmp.eq.s32.totalorder %s16, 7
    %p76 = por %p74, %p75
    %p77 = scmp.ne.s32.totalorder %s66, %s67
    %p78 = scmp.eq.s32.totalorder %s16, 0
    %p79 = por %p77, %p78
    %p80 = scmp.ne.s32.totalorder %s66, %s67
    %p81 = scmp.eq.s32.totalorder %s17, 7
    %p82 = por %p80, %p81
    %p84 = scmp.ne.s32.totalorder %s67, %s83
    %p85 = scmp.eq.s32.totalorder %s17, 0
    %p86 = por %p84, %p85
    %s87 = ssub.s32 %s18, %s30
    %s88 = ssub.s32 %s19, %s26
    %s89 = sor.u32 %s87, %s88
    %p90 = scmp.eq.s32.totalorder %s89, 0
    %s92 = sadd.s32 %s91, 1
    %s93 = scalar_select %p90, %s91, %s92
    %p96 = pneg %p90
    %p97 = scmp.eq.s32.totalorder %s11, 7
    %p98 = por %p96, %p97
    %p99 = scmp.ne.s32.totalorder %s91, %s94
    %p100 = scmp.eq.s32.totalorder %s11, 0
    %p101 = por %p99, %p100
    %p102 = scmp.ne.s32.totalorder %s91, %s94
    %p103 = scmp.eq.s32.totalorder %s16, 7
    %p104 = por %p102, %p103
    %p105 = scmp.ne.s32.totalorder %s94, %s95
    %p106 = scmp.eq.s32.totalorder %s16, 0
    %p107 = por %p105, %p106
    %p108 = scmp.ne.s32.totalorder %s94, %s95
    %p109 = scmp.eq.s32.totalorder %s17, 7
    %p110 = por %p108, %p109
    %p112 = scmp.ne.s32.totalorder %s95, %s111
    %p113 = scmp.eq.s32.totalorder %s17, 0
    %p114 = por %p112, %p113
    %s115 = ssub.s32 %s18, %s30
    %s116 = ssub.s32 %s19, %s26
    %s117 = sor.u32 %s115, %s116
    %p118 = scmp.eq.s32.totalorder %s117, 0
    %s120 = sadd.s32 %s119, 1
    %s121 = scalar_select %p118, %s119, %s120
    %p124 = pneg %p118
    %p125 = scmp.eq.s32.totalorder %s11, 7
    %p126 = por %p124, %p125
    %p127 = scmp.ne.s32.totalorder %s119, %s122
    %p128 = scmp.eq.s32.totalorder %s11, 0
    %p129 = por %p127, %p128
    %p130 = scmp.ne.s32.totalorder %s119, %s122
    %p131 = scmp.eq.s32.totalorder %s16, 7
    %p132 = por %p130, %p131
    %p133 = scmp.ne.s32.totalorder %s122, %s123
    %p134 = scmp.eq.s32.totalorder %s16, 0
    %p135 = por %p133, %p134
    %p136 = scmp.ne.s32.totalorder %s122, %s123
    %p137 = scmp.eq.s32.totalorder %s17, 7
    %p138 = por %p136, %p137
    %p140 = scmp.ne.s32.totalorder %s123, %s139
    %p141 = scmp.eq.s32.totalorder %s17, 0
    %p142 = por %p140, %p141
    %s143 = ssub.s32 %s18, %s30
    %s144 = ssub.s32 %s19, %s26
    %s145 = sor.u32 %s143, %s144
    %p146 = scmp.eq.s32.totalorder %s145, 0
    %s148 = sadd.s32 %s147, 1
    %s149 = scalar_select %p146, %s147, %s148
    %p152 = pneg %p146
    %p153 = scmp.eq.s32.totalorder %s11, 7
    %p154 = por %p152, %p153
    %p155 = scmp.ne.s32.totalorder %s147, %s150
    %p156 = scmp.eq.s32.totalorder %s11, 0
    %p157 = por %p155, %p156
    %p158 = scmp.ne.s32.totalorder %s147, %s150
    %p159 = scmp.eq.s32.totalorder %s16, 7
    %p160 = por %p158, %p159
    %p161 = scmp.ne.s32.totalorder %s150, %s151
    %p162 = scmp.eq.s32.totalorder %s16, 0
    %p163 = por %p161, %p162
    %p164 = scmp.ne.s32.totalorder %s150, %s151
    %p165 = scmp.eq.s32.totalorder %s17, 7
    %p166 = por %p164, %p165
    %p168 = scmp.ne.s32.totalorder %s151, %s167
    %p169 = scmp.eq.s32.totalorder %s17, 0
    %p170 = por %p168, %p169
    %s171 = ssub.s32 %s18, %s30
    %s172 = ssub.s32 %s19, %s26
    %s173 = sor.u32 %s171, %s172
    %p174 = scmp.eq.s32.totalorder %s173, 0
    %s176 = sadd.s32 %s175, 1
    %s177 = scalar_select %p174, %s175, %s176
    %p180 = pneg %p174
    %p181 = scmp.eq.s32.totalorder %s11, 7
    %p182 = por %p180, %p181
    %p183 = scmp.ne.s32.totalorder %s175, %s178
    %p184 = scmp.eq.s32.totalorder %s11, 0
    %p185 = por %p183, %p184
    %p186 = scmp.ne.s32.totalorder %s175, %s178
    %p187 = scmp.eq.s32.totalorder %s16, 7
    %p188 = por %p186, %p187
    %p189 = scmp.ne.s32.totalorder %s178, %s179
    %p190 = scmp.eq.s32.totalorder %s16, 0
    %p191 = por %p189, %p190
    %p192 = scmp.ne.s32.totalorder %s178, %s179
    %p193 = scmp.eq.s32.totalorder %s17, 7
    %p194 = por %p192, %p193
    %p196 = scmp.ne.s32.totalorder %s179, %s195
    %p197 = scmp.eq.s32.totalorder %s17, 0
    %p198 = por %p196, %p197
    %p199 = scmp.le.s32.totalorder 1, %s11
    %p200 = scmp.lt.s32.totalorder %s11, 9
    %p201 = pnand %p199, %p200
    %p202 = pneg %p201
    // Predicated region
    $region9: #{prob_attention.3} parent=5 // pred_check
      _
    $region10: #{prob_attention.3} parent=5 // pred_check_branch
      %204 = sbr.rel (%p201) target = $region12
    $region11: #{prob_attention.3} parent=5 // pred_region
      %s205 = ssub.s32 %s11, 1
    $region12: #{prob_attention.3} parent=5 // pred_fallthru
      _
    %p206 = scmp.lt.s32.totalorder %s11, 8
    // Predicated region
    $region13: #{prob_attention.3} parent=5 // pred_check
      %p207 = pneg %p206
    $region14: #{prob_attention.3} parent=5 // pred_check_branch
      %209 = sbr.rel (%p207) target = $region16
    $region15: #{prob_attention.3} parent=5 // pred_region
      // Predicated region
      $region17: #{prob_attention.3} parent=15 // pred_check
        %p210 = pneg %p45
      $region18: #{prob_attention.3} parent=15 // pred_check_branch
        %212 = sbr.rel (%p210) target = $region20
      $region19: #{prob_attention.3} parent=15 // pred_region
        %p213 = scmp.lt.s32.totalorder %s18, 1
        %s214 = scalar_select %p213, %s18, 1
        %p215 = scmp.lt.s32.totalorder %s19, 3
        %s216 = scalar_select %p215, %s19, 3
        %s217 = smul.addr %s214, 4
        %s218 = sadd.s32 %s216, %s217
        %s219 = smul.addr %s218, 8
        %s220 = scalar_lea.vmem %s0, %s219
      $region20: #{prob_attention.3} parent=15 // pred_fallthru
        _
      // Predicated region
      $region21: #{prob_attention.3} parent=15 // pred_check
        %p221 = pneg %p73
      $region22: #{prob_attention.3} parent=15 // pred_check_branch
        %223 = sbr.rel (%p221) target = $region24
      $region23: #{prob_attention.3} parent=15 // pred_region
        %p224 = scmp.lt.s32.totalorder %s18, 1
        %s225 = scalar_select %p224, %s18, 1
        %p226 = scmp.lt.s32.totalorder %s19, 3
        %s227 = scalar_select %p226, %s19, 3
        %s228 = smul.addr %s227, 2
        %s229 = smul.addr %s225, 8
        %s230 = sadd.s32 %s228, %s229
        %s231 = smul.addr %s230, 8
        %s232 = scalar_lea.vmem %s1, %s231
      $region24: #{prob_attention.3} parent=15 // pred_fallthru
        _
      // Predicated region
      $region25: #{prob_attention.3} parent=15 // pred_check
        %p233 = pneg %p101
      $region26: #{prob_attention.3} parent=15 // pred_check_branch
        %235 = sbr.rel (%p233) target = $region28
      $region27: #{prob_attention.3} parent=15 // pred_region
        %p236 = scmp.lt.s32.totalorder %s18, 1
        %s237 = scalar_select %p236, %s18, 1
        %p238 = scmp.lt.s32.totalorder %s19, 3
        %s239 = scalar_select %p238, %s19, 3
        %s240 = smul.addr %s239, 2
        %s241 = smul.addr %s237, 8
        %s242 = sadd.s32 %s240, %s241
        %s243 = smul.addr %s242, 8
        %s244 = scalar_lea.vmem %s2, %s243
      $region28: #{prob_attention.3} parent=15 // pred_fallthru
        _
      // Predicated region
      $region29: #{prob_attention.3} parent=15 // pred_check
        %p245 = pneg %p129
      $region30: #{prob_attention.3} parent=15 // pred_check_branch
        %247 = sbr.rel (%p245) target = $region32
      $region31: #{prob_attention.3} parent=15 // pred_region
        %p248 = scmp.lt.s32.totalorder %s18, 1
        %s249 = scalar_select %p248, %s18, 1
        %p250 = scmp.lt.s32.totalorder %s19, 3
        %s251 = scalar_select %p250, %s19, 3
        %s252 = smul.addr %s249, 4
        %s253 = sadd.s32 %s251, %s252
        %s254 = smul.addr %s253, 8
        %s255 = scalar_lea.vmem %s3, %s254
      $region32: #{prob_attention.3} parent=15 // pred_fallthru
        _
      // Predicated region
      $region33: #{prob_attention.3} parent=15 // pred_check
        %p256 = pneg %p157
      $region34: #{prob_attention.3} parent=15 // pred_check_branch
        %258 = sbr.rel (%p256) target = $region36
      $region35: #{prob_attention.3} parent=15 // pred_region
        %p259 = scmp.lt.s32.totalorder %s18, 1
        %s260 = scalar_select %p259, %s18, 1
        %p261 = scmp.lt.s32.totalorder %s19, 3
        %s262 = scalar_select %p261, %s19, 3
        %s263 = smul.addr %s260, 4
        %s264 = sadd.s32 %s262, %s263
        %s265 = scalar_lea.vmem %s4, %s264
      $region36: #{prob_attention.3} parent=15 // pred_fallthru
        _
    $region16: #{prob_attention.3} parent=5 // pred_fallthru
      _
    %p266 = scmp.le.s32.totalorder 1, %s11
    %p267 = scmp.lt.s32.totalorder %s11, 9
    %p268 = pnand %p266, %p267
    %p269 = pneg %p268
    // Predicated region
    $region37: #{prob_attention.3} parent=5 // pred_check
      _
    $region38: #{prob_attention.3} parent=5 // pred_check_branch
      %271 = sbr.rel (%p268) target = $region40
    $region39: #{prob_attention.3} parent=5 // pred_region
      %s272 = ssub.s32 %s11, 1
      %p273 = scmp.lt.s32.totalorder %s20, 1
      %s274 = scalar_select %p273, %s20, 1
      %p275 = scmp.lt.s32.totalorder %s21, 3
      %s276 = scalar_select %p275, %s21, 3
      %s277 = smul.addr %s274, 4
      %s278 = sadd.s32 %s276, %s277
      %s279 = smul.addr %s278, 8
      %s280 = scalar_lea.vmem %s0, %s279
      %p281 = pneg %p51
      %p282 = pneg %p48
      %p283 = scmp.lt.s32.totalorder %s20, 1
      %s284 = scalar_select %p283, %s20, 1
      %p285 = scmp.lt.s32.totalorder %s21, 3
      %s286 = scalar_select %p285, %s21, 3
      %s287 = smul.addr %s286, 2
      %s288 = smul.addr %s284, 8
      %s289 = sadd.s32 %s287, %s288
      %s290 = smul.addr %s289, 8
      %s291 = scalar_lea.vmem %s1, %s290
      %p292 = pneg %p79
      %p293 = pneg %p76
      %p294 = scmp.lt.s32.totalorder %s20, 1
      %s295 = scalar_select %p294, %s20, 1
      %p296 = scmp.lt.s32.totalorder %s21, 3
      %s297 = scalar_select %p296, %s21, 3
      %s298 = smul.addr %s297, 2
      %s299 = smul.addr %s295, 8
      %s300 = sadd.s32 %s298, %s299
      %s301 = smul.addr %s300, 8
      %s302 = scalar_lea.vmem %s2, %s301
      %p303 = pneg %p107
      %p304 = pneg %p104
      %p305 = scmp.lt.s32.totalorder %s20, 1
      %s306 = scalar_select %p305, %s20, 1
      %p307 = scmp.lt.s32.totalorder %s21, 3
      %s308 = scalar_select %p307, %s21, 3
      %s309 = smul.addr %s306, 4
      %s310 = sadd.s32 %s308, %s309
      %s311 = smul.addr %s310, 8
      %s312 = scalar_lea.vmem %s3, %s311
      %p313 = pneg %p135
      %p314 = pneg %p132
      %p315 = scmp.lt.s32.totalorder %s20, 1
      %s316 = scalar_select %p315, %s20, 1
      %p317 = scmp.lt.s32.totalorder %s21, 3
      %s318 = scalar_select %p317, %s21, 3
      %s319 = smul.addr %s316, 4
      %s320 = sadd.s32 %s318, %s319
      %s321 = scalar_lea.vmem %s4, %s320
      %p322 = pneg %p163
      %p323 = pneg %p160
      %p324 = pneg %p191
      %p325 = pneg %p188
      %p326 = scmp.lt.s32.totalorder %s20, 1
      %s327 = scalar_select %p326, %s20, 1
      %p328 = scmp.lt.s32.totalorder %s21, 3
      %s329 = scalar_select %p328, %s21, 3
      %s330 = smul.addr %s329, 2
      %s331 = smul.addr %s327, 8
      %s332 = sadd.s32 %s330, %s331
      %s333 = smul.addr %s332, 8
      %s334 = scalar_lea.vmem %s5, %s333
      %p335 = scmp.lt.s32.totalorder %s20, 1
      %s336 = scalar_select %p335, %s20, 1
      %p337 = scmp.lt.s32.totalorder %s21, 3
      %s338 = scalar_select %p337, %s21, 3
      %s339 = smul.addr %s336, 4
      %s340 = sadd.s32 %s338, %s339
      %s341 = smul.addr %s340, 8
      %s342 = scalar_lea.vmem %s0, %s341
      %p343 = scmp.lt.s32.totalorder %s20, 1
      %s344 = scalar_select %p343, %s20, 1
      %p345 = scmp.lt.s32.totalorder %s21, 3
      %s346 = scalar_select %p345, %s21, 3
      %s347 = smul.addr %s346, 2
      %s348 = smul.addr %s344, 8
      %s349 = sadd.s32 %s347, %s348
      %s350 = smul.addr %s349, 8
      %s351 = scalar_lea.vmem %s1, %s350
      %p352 = scmp.lt.s32.totalorder %s20, 1
      %s353 = scalar_select %p352, %s20, 1
      %p354 = scmp.lt.s32.totalorder %s21, 3
      %s355 = scalar_select %p354, %s21, 3
      %s356 = smul.addr %s355, 2
      %s357 = smul.addr %s353, 8
      %s358 = sadd.s32 %s356, %s357
      %s359 = smul.addr %s358, 8
      %s360 = scalar_lea.vmem %s2, %s359
      %p361 = scmp.lt.s32.totalorder %s20, 1
      %s362 = scalar_select %p361, %s20, 1
      %p363 = scmp.lt.s32.totalorder %s21, 3
      %s364 = scalar_select %p363, %s21, 3
      %s365 = smul.addr %s362, 4
      %s366 = sadd.s32 %s364, %s365
      %s367 = smul.addr %s366, 8
      %s368 = scalar_lea.vmem %s3, %s367
      %p369 = scmp.lt.s32.totalorder %s20, 1
      %s370 = scalar_select %p369, %s20, 1
      %p371 = scmp.lt.s32.totalorder %s21, 3
      %s372 = scalar_select %p371, %s21, 3
      %s373 = smul.addr %s370, 4
      %s374 = sadd.s32 %s372, %s373
      %s375 = scalar_lea.vmem %s4, %s374
      %p376 = scmp.lt.s32.totalorder %s20, 1
      %s377 = scalar_select %p376, %s20, 1
      %p378 = scmp.lt.s32.totalorder %s21, 3
      %s379 = scalar_select %p378, %s21, 3
      %s380 = smul.addr %s379, 2
      %s381 = smul.addr %s377, 8
      %s382 = sadd.s32 %s380, %s381
      %s383 = smul.addr %s382, 8
      %s384 = scalar_lea.vmem %s5, %s383
      %v386 = vld [vmem:[%s342] sm:$0x3f]
      %v387 = vpack.c.bf16 %v386, %v386
      %v388 = vld [vmem:[%s351] sm:$0xff]
      %v389 = vld [vmem:[%s351 + $0x8] sm:$0xff]
      %v390 = vpack.c.bf16 %v389, %v388
      %v391 = vld [vmem:[%s360] sm:$0xff]
      %v392 = vld [vmem:[%s360 + $0x8] sm:$0xff]
      %v393 = vld [vmem:[%s368] sm:$0x3f]
      %v394 = vld [vmem:[%s375] sm:$0x1]
      %v395 = vlaneseq
      %v396 = vshrl.u32 %v395, 7
      %v397 = vadd.s32 %v396, 8
      %v398 = vlaneseq
      %v399 = vand.u32 %v398, 127
      %vm400 = vcmp.ge.s32.totalorder %v396, %v399
      %vm401 = vcmp.ge.s32.totalorder %v397, %v399
      %v402 = vsel %vm400, 1, 0
      %v403 = vsel %vm401, 1, 0
      %v404 = vcvt.s32.f32 %v402
      %v405 = vcvt.s32.f32 %v403
      %vm406 = vcmask 130048
      %v408 = vsel %vm406, %v404, 0
      %v411 = vsel %vm406, %v405, 0
      %413 = vmatprep.subr.mxu0 0.0
      %414 = vmatpush1.msra.mxu0 %v391
      %415 = vmatprep.subr.mxu0 0.0
      %416 = vmatpush1.msra.mxu0 %v392
      %417 = vmatprep.subr.mxu0 0.0
      %418 = vmatpush1.msra.mxu0 0.0
      %419 = vmatprep.subr.mxu0 0.0
      %420 = vmatpush1.msra.mxu0 0.0
      %421 = vmatprep.subr.mxu0 0.0
      %422 = vmatpush1.msra.mxu0 0.0
      %423 = vmatprep.subr.mxu0 0.0
      %424 = vmatpush1.msra.mxu0 0.0
      %425 = vmatprep.subr.mxu0 0.0
      %426 = vmatpush1.msra.mxu0 0.0
      %427 = vmatprep.subr.mxu0 0.0
      %428 = vmatpush1.msra.mxu0 0.0
      %429 = vmatprep.subr.mxu0 0.0
      %430 = vmatpush1.msra.mxu0 0.0
      %431 = vmatprep.subr.mxu0 0.0
      %432 = vmatpush1.msra.mxu0 0.0
      %433 = vmatprep.subr.mxu0 0.0
      %434 = vmatpush1.msra.mxu0 0.0
      %435 = vmatprep.subr.mxu0 0.0
      %436 = vmatpush1.msra.mxu0 0.0
      %437 = vmatprep.subr.mxu0 0.0
      %438 = vmatpush1.msra.mxu0 0.0
      %439 = vmatprep.subr.mxu0 0.0
      %440 = vmatpush1.msra.mxu0 0.0
      %441 = vmatprep.subr.mxu0 0.0
      %442 = vmatpush1.msra.mxu0 0.0
      %443 = vmatprep.subr.mxu0 0.0
      %444 = vmatpush1.msra.mxu0 0.0
      %445 = vmatprep.subr.mxu0 0.0
      %446 = vmatpush1.msra.mxu0 0.0
      %447 = vmatprep.subr.mxu0 0.0
      %448 = vmatpush1.msra.mxu0 0.0
      %449 = vmatprep.subr.mxu0 0.0
      %450 = vmatpush1.msra.mxu0 0.0
      %451 = vmatprep.subr.mxu0 0.0
      %452 = vmatpush1.msra.mxu0 0.0
      %453 = vmatprep.subr.mxu0 0.0
      %454 = vmatpush1.msra.mxu0 0.0
      %455 = vmatprep.subr.mxu0 0.0
      %456 = vmatpush1.msra.mxu0 0.0
      %457 = vmatprep.subr.mxu0 0.0
      %458 = vmatpush1.msra.mxu0 0.0
      %459 = vmatprep.subr.mxu0 0.0
      %460 = vmatpush1.msra.mxu0 0.0
      %461 = vmatprep.subr.mxu0 0.0
      %462 = vmatpush1.msra.mxu0 0.0
      %463 = vmatprep.subr.mxu0 0.0
      %464 = vmatpush1.msra.mxu0 0.0
      %465 = vmatprep.subr.mxu0 0.0
      %466 = vmatpush1.msra.mxu0 0.0
      %467 = vmatprep.subr.mxu0 0.0
      %468 = vmatpush1.msra.mxu0 0.0
      %469 = vmatprep.subr.mxu0 0.0
      %470 = vmatpush1.msra.mxu0 0.0
      %471 = vmatprep.subr.mxu0 0.0
      %472 = vmatpush1.msra.mxu0 0.0
      %473 = vmatprep.subr.mxu0 0.0
      %474 = vmatpush1.msra.mxu0 0.0
      %475 = vmatprep.subr.mxu0 0.0
      %476 = vmatpush1.msra.mxu0 0.0
      %477 = vmatprep.mubr.f32.mxu0 0.0
      %478 = vmatmul.mubr.f32.gmra.mrb[0].mxu0 %v408
      %v479 = vpop.f32.mrb[0].mxu0
      %v480 = vadd.f32 0.0, %v479
      %v481 = vpop.f32.mrb[0].mxu0
      %482 = vmatprep.mubr.f32.mxu0 0.0
      %483 = vmatmul.mubr.f32.gmra.mrb[0].mxu0 %v411
      %v484 = vpop.f32.mrb[0].mxu0
      %v485 = vadd.f32 0.0, %v484
      %v486 = vpop.f32.mrb[0].mxu0
      %487 = vdwg.mxu0
      %vm488 = vcmask 261120
      %v490 = vsel %vm488, %v387, 0
      %v493 = vsel %vm488, %v390, 0
      %495 = vmatprep.subr.bf16.mxu0 0
      %496 = vmatpush1.bf16.xpose.msra.mxu0 %v493
      %497 = vmatprep.subr.bf16.mxu0 0
      %498 = vmatpush1.bf16.xpose.msra.mxu0 0
      %499 = vmatprep.subr.bf16.mxu0 0
      %500 = vmatpush1.bf16.xpose.msra.mxu0 0
      %501 = vmatprep.subr.bf16.mxu0 0
      %502 = vmatpush1.bf16.xpose.msra.mxu0 0
      %503 = vmatprep.subr.bf16.mxu0 0
      %504 = vmatpush1.bf16.xpose.msra.mxu0 0
      %505 = vmatprep.subr.bf16.mxu0 0
      %506 = vmatpush1.bf16.xpose.msra.mxu0 0
      %507 = vmatprep.subr.bf16.mxu0 0
      %508 = vmatpush1.bf16.xpose.msra.mxu0 0
      %509 = vmatprep.subr.bf16.mxu0 0
      %510 = vmatpush1.bf16.xpose.msra.mxu0 0
      %511 = vmatprep.subr.bf16.mxu0 0
      %512 = vmatpush1.bf16.xpose.msra.mxu0 0
      %513 = vmatprep.subr.bf16.mxu0 0
      %514 = vmatpush1.bf16.xpose.msra.mxu0 0
      %515 = vmatprep.subr.bf16.mxu0 0
      %516 = vmatpush1.bf16.xpose.msra.mxu0 0
      %517 = vmatprep.subr.bf16.mxu0 0
      %518 = vmatpush1.bf16.xpose.msra.mxu0 0
      %519 = vmatprep.subr.bf16.mxu0 0
      %520 = vmatpush1.bf16.xpose.msra.mxu0 0
      %521 = vmatprep.subr.bf16.mxu0 0
      %522 = vmatpush1.bf16.xpose.msra.mxu0 0
      %523 = vmatprep.subr.bf16.mxu0 0
      %524 = vmatpush1.bf16.xpose.msra.mxu0 0
      %525 = vmatprep.subr.bf16.mxu0 0
      %526 = vmatpush1.bf16.xpose.msra.mxu0 0
      %527 = vmatprep.mubr.bf16.mxu0 0
      %528 = vmatmul.mubr.bf16.gmra.mrb[0].mxu0 %v490
      %v529 = vpop.f32.mrb[0].mxu0
      %v530 = vadd.f32 0.0, %v529
      %v531 = vpop.f32.mrb[0].mxu0
      %v532 = vpop.f32.mrb[0].mxu0
      %v533 = vpop.f32.mrb[0].mxu0
      %534 = vdwg.mxu0
      %v535 = vmul.f32 %v530, 0.17677669
      %536 = vset.pattern.permute.xlu0 0
      %537 = vperm.xlu0 %536, %v393
      %v538 = vpop.permute.xlu0 %537
      %vm539 = vcmp.gt.s32.totalorder %v399, %v538
      %v540 = vsel %vm539, -inf, %v535
      %vm541 = vcmask 128000
      %v542 = vsel %vm541, %v540, -inf
      %543 = vmax.xlane.f32.xlu0 %v542
      %v544 = vpop.xlane.xlu0 %543
      %v545 = vsub.f32 %v540, %v544
      %v546 = vmul.f32 %v545, 1.442695
      %v547 = vpow.pop %v546
      %v548 = vsel %vm541, %v547, 0.0
      %549 = vadd.xlane.f32.xlu0 %v548
      %v550 = vpop.xlane.xlu0 %549
      %v551 = vrcp.pop %v550
      %v552 = vmul.f32 %v547, %v551
      %v553 = vpack.c.bf16 %v552, %v552
      %v554 = vpack.c.bf16 %v392, %v391
      %v556 = vsel %vm406, %v553, 0
      %558 = vmatprep.subr.bf16.mxu0 0
      %559 = vmatpush1.bf16.msra.mxu0 %v554
      %560 = vmatprep.subr.bf16.mxu0 0
      %561 = vmatpush1.bf16.msra.mxu0 0
      %562 = vmatprep.subr.bf16.mxu0 0
      %563 = vmatpush1.bf16.msra.mxu0 0
      %564 = vmatprep.subr.bf16.mxu0 0
      %565 = vmatpush1.bf16.msra.mxu0 0
      %566 = vmatprep.subr.bf16.mxu0 0
      %567 = vmatpush1.bf16.msra.mxu0 0
      %568 = vmatprep.subr.bf16.mxu0 0
      %569 = vmatpush1.bf16.msra.mxu0 0
      %570 = vmatprep.subr.bf16.mxu0 0
      %571 = vmatpush1.bf16.msra.mxu0 0
      %572 = vmatprep.subr.bf16.mxu0 0
      %573 = vmatpush1.bf16.msra.mxu0 0
      %574 = vmatprep.subr.bf16.mxu0 0
      %575 = vmatpush1.bf16.msra.mxu0 0
      %576 = vmatprep.subr.bf16.mxu0 0
      %577 = vmatpush1.bf16.msra.mxu0 0
      %578 = vmatprep.subr.bf16.mxu0 0
      %579 = vmatpush1.bf16.msra.mxu0 0
      %580 = vmatprep.subr.bf16.mxu0 0
      %581 = vmatpush1.bf16.msra.mxu0 0
      %582 = vmatprep.subr.bf16.mxu0 0
      %583 = vmatpush1.bf16.msra.mxu0 0
      %584 = vmatprep.subr.bf16.mxu0 0
      %585 = vmatpush1.bf16.msra.mxu0 0
      %586 = vmatprep.subr.bf16.mxu0 0
      %587 = vmatpush1.bf16.msra.mxu0 0
      %588 = vmatprep.subr.bf16.mxu0 0
      %589 = vmatpush1.bf16.msra.mxu0 0
      %590 = vmatprep.mubr.bf16.mxu0 0
      %591 = vmatmul.mubr.bf16.gmra.mrb[0].mxu0 %v556
      %v592 = vpop.f32.mrb[0].mxu0
      %v593 = vadd.f32 0.0, %v592
      %v594 = vpop.f32.mrb[0].mxu0
      %v595 = vpop.f32.mrb[0].mxu0
      %v596 = vpop.f32.mrb[0].mxu0
      %597 = vdwg.mxu0
      %v598 = vlaneseq
      %v599 = vshrl.u32 %v598, 7
      %v600 = vsub.s32 0, %v599
      %v601 = vrot.slane %v394, %v600
      %vm602 = vcmp.eq.s32.totalorder %v396, %v601
      %vm603 = vcmp.eq.s32.totalorder %v397, %v601
      %v604 = vsel %vm602, 1, 0
      %v605 = vsel %vm603, 1, 0
      %v606 = vcvt.s32.f32 %v604
      %v607 = vcvt.s32.f32 %v605
      %vm608 = vcmask 48128
      %v610 = vsel %vm608, %v606, 0
      %v613 = vsel %vm608, %v607, 0
      %vm615 = vcmask 1045504
      %v617 = vsel %vm615, %v593, 0
      %619 = vmatprep.subr.mxu0 0.0
      %620 = vmatpush1.msra.mxu0 %v617
      %621 = vmatprep.subr.mxu0 0.0
      %622 = vmatpush1.msra.mxu0 0.0
      %623 = vmatprep.subr.mxu0 0.0
      %624 = vmatpush1.msra.mxu0 0.0
      %625 = vmatprep.subr.mxu0 0.0
      %626 = vmatpush1.msra.mxu0 0.0
      %627 = vmatprep.subr.mxu0 0.0
      %628 = vmatpush1.msra.mxu0 0.0
      %629 = vmatprep.subr.mxu0 0.0
      %630 = vmatpush1.msra.mxu0 0.0
      %631 = vmatprep.subr.mxu0 0.0
      %632 = vmatpush1.msra.mxu0 0.0
      %633 = vmatprep.subr.mxu0 0.0
      %634 = vmatpush1.msra.mxu0 0.0
      %635 = vmatprep.subr.mxu0 0.0
      %636 = vmatpush1.msra.mxu0 0.0
      %637 = vmatprep.subr.mxu0 0.0
      %638 = vmatpush1.msra.mxu0 0.0
      %639 = vmatprep.subr.mxu0 0.0
      %640 = vmatpush1.msra.mxu0 0.0
      %641 = vmatprep.subr.mxu0 0.0
      %642 = vmatpush1.msra.mxu0 0.0
      %643 = vmatprep.subr.mxu0 0.0
      %644 = vmatpush1.msra.mxu0 0.0
      %645 = vmatprep.subr.mxu0 0.0
      %646 = vmatpush1.msra.mxu0 0.0
      %647 = vmatprep.subr.mxu0 0.0
      %648 = vmatpush1.msra.mxu0 0.0
      %649 = vmatprep.subr.mxu0 0.0
      %650 = vmatpush1.msra.mxu0 0.0
      %651 = vmatprep.subr.mxu0 0.0
      %652 = vmatpush1.msra.mxu0 0.0
      %653 = vmatprep.subr.mxu0 0.0
      %654 = vmatpush1.msra.mxu0 0.0
      %655 = vmatprep.subr.mxu0 0.0
      %656 = vmatpush1.msra.mxu0 0.0
      %657 = vmatprep.subr.mxu0 0.0
      %658 = vmatpush1.msra.mxu0 0.0
      %659 = vmatprep.subr.mxu0 0.0
      %660 = vmatpush1.msra.mxu0 0.0
      %661 = vmatprep.subr.mxu0 0.0
      %662 = vmatpush1.msra.mxu0 0.0
      %663 = vmatprep.subr.mxu0 0.0
      %664 = vmatpush1.msra.mxu0 0.0
      %665 = vmatprep.subr.mxu0 0.0
      %666 = vmatpush1.msra.mxu0 0.0
      %667 = vmatprep.subr.mxu0 0.0
      %668 = vmatpush1.msra.mxu0 0.0
      %669 = vmatprep.subr.mxu0 0.0
      %670 = vmatpush1.msra.mxu0 0.0
      %671 = vmatprep.subr.mxu0 0.0
      %672 = vmatpush1.msra.mxu0 0.0
      %673 = vmatprep.subr.mxu0 0.0
      %674 = vmatpush1.msra.mxu0 0.0
      %675 = vmatprep.subr.mxu0 0.0
      %676 = vmatpush1.msra.mxu0 0.0
      %677 = vmatprep.subr.mxu0 0.0
      %678 = vmatpush1.msra.mxu0 0.0
      %679 = vmatprep.subr.mxu0 0.0
      %680 = vmatpush1.msra.mxu0 0.0
      %681 = vmatprep.subr.mxu0 0.0
      %682 = vmatpush1.msra.mxu0 0.0
      %683 = vmatprep.mubr.f32.mxu0 0.0
      %684 = vmatmul.mubr.f32.gmra.mrb[0].mxu0 %v610
      %v685 = vpop.f32.mrb[0].mxu0
      %v686 = vadd.f32 0.0, %v685
      %v687 = vpop.f32.mrb[0].mxu0
      %688 = vmatprep.mubr.f32.mxu0 0.0
      %689 = vmatmul.mubr.f32.gmra.mrb[0].mxu0 %v613
      %v690 = vpop.f32.mrb[0].mxu0
      %v691 = vadd.f32 0.0, %v690
      %v692 = vpop.f32.mrb[0].mxu0
      %693 = vdwg.mxu0
      %v694 = vsel %vm608, %v606, 0.0
      %695 = vadd.xlane.f32.xlu0 %v694
      %v696 = vpop.xlane.xlu0 %695
      %v697 = vsel %vm608, %v607, 0.0
      %698 = vadd.xlane.f32.xlu0 %v697
      %v699 = vpop.xlane.xlu0 %698
      %vm700 = vcmp.gt.f32.partialorder %v696, 0.5
      %vm701 = vcmp.gt.f32.partialorder %v699, 0.5
      %v702 = vsel %vm700, 1, 0
      %v703 = vsel %vm701, 1, 0
      %vm704 = vcmp.eq.s32.totalorder %v702, 1
      %vm705 = vcmp.eq.s32.totalorder %v703, 1
      %v706 = vsel %vm704, %v686, %v480
      %v707 = vsel %vm705, %v691, %v485
      %708 = vst.msk [vmem:[%s384] sm:$0xff] %vm488, %v706
      %709 = vst.msk [vmem:[%s384 + $0x8] sm:$0xff] %vm488, %v707
      %p710 = scmp.lt.s32.totalorder %s20, 1
      %s711 = scalar_select %p710, %s20, 1
      %p712 = scmp.lt.s32.totalorder %s21, 3
      %s713 = scalar_select %p712, %s21, 3
      %s714 = smul.addr %s713, 2
      %s715 = smul.addr %s711, 8
      %s716 = sadd.s32 %s714, %s715
      %s717 = smul.addr %s716, 8
      %s718 = scalar_lea.vmem %s5, %s717
      // Predicated region
      $region41: #{prob_attention.3} parent=39 // pred_check
        %p719 = pneg %p188
      $region42: #{prob_attention.3} parent=39 // pred_check_branch
        %721 = sbr.rel (%p719) target = $region44
      $region43: #{prob_attention.3} parent=39 // pred_region
        _
      $region44: #{prob_attention.3} parent=39 // pred_fallthru
        _
    $region40: #{prob_attention.3} parent=5 // pred_fallthru
      _
    %p722 = scmp.le.s32.totalorder 2, %s11
    // Predicated region
    $region45: #{prob_attention.3} parent=5 // pred_check
      %p723 = pneg %p722
    $region46: #{prob_attention.3} parent=5 // pred_check_branch
      %725 = sbr.rel (%p723) target = $region48
    $region47: #{prob_attention.3} parent=5 // pred_region
      %s726 = ssub.s32 %s11, 2
      // Predicated region
      $region49: #{prob_attention.3} parent=47 // pred_check
        %p727 = pneg %p194
      $region50: #{prob_attention.3} parent=47 // pred_check_branch
        %729 = sbr.rel (%p727) target = $region52
      $region51: #{prob_attention.3} parent=47 // pred_region
        %p730 = scmp.lt.s32.totalorder %s22, 1
        %s731 = scalar_select %p730, %s22, 1
        %p732 = scmp.lt.s32.totalorder %s23, 3
        %s733 = scalar_select %p732, %s23, 3
        %s734 = smul.addr %s733, 2
        %s735 = smul.addr %s731, 8
        %s736 = sadd.s32 %s734, %s735
        %s737 = smul.addr %s736, 8
        %s738 = scalar_lea.vmem %s5, %s737
      $region52: #{prob_attention.3} parent=47 // pred_fallthru
        _
    $region48: #{prob_attention.3} parent=5 // pred_fallthru
      _
  $region6: #{prob_attention.3} parent=0 // loop_footer
    %s15 = sadd.s32 1, %s11
  $region7: #{prob_attention.3} parent=0 // loop_footer_branch
    %10 = sbr.rel target = $region3
  $region8: #{prob_attention.3} parent=0 // loop_exit
    _

</llo_original>
